<compile_context>
chip_gen: v7x
topology: tpu7x:2x2x1
jax: 0.10.0
libtpu: 0.0.40
codegen_flags: <defaults>
</compile_context>

<pallas_src>
import functools

import jax
import jax.numpy as jnp
from jax.experimental import pallas as pl
from jax.experimental.pallas import tpu as pltpu


def _bert_embed_kernel(
    tok_ref,      # SMEM (batch*pos_padded,) int32   [scalar prefetch]
    w_e_hbm,      # ANY  (d_vocab, d_model)          word-embedding table in HBM
    w_pos_ref,    # VMEM (tile_pos, d_model)         positional rows for this tile
    w_tt_ref,     # VMEM (2, d_model)                token-type table
    tt_ref,       # VMEM (tile_pos, 1) f32           token-type ids (0./1.) for this tile
    lnw_ref,      # VMEM (1, d_model)                LayerNorm weight
    lnb_ref,      # VMEM (1, d_model)                LayerNorm bias
    out_ref,      # VMEM (tile_pos, d_model)         output tile
    emb_buf,      # VMEM scratch (2, tile_pos, d_model), dtype of W_E
    sems,         # DMA semaphores (2,)
    *, pos_padded, tile_pos, eps,
):
    j = pl.program_id(0)          # pos-tile index   (parallel / outer)
    b = pl.program_id(1)          # batch index      (arbitrary / inner)
    n_b = pl.num_programs(1)
    slot = b % 2

    tile_row0 = j * tile_pos      # first row of this tile within a sequence
    n_chunks = tile_pos // 8

    def issue_gather(seq_idx, slot_idx):
        """Issue per-row HBM->VMEM copies for one (sequence, pos-tile) into a slot.

        All rows share sems[slot_idx]; the consumer does ONE bulk wait.
        """
        row0 = seq_idx * pos_padded + tile_row0

        @pl.loop(0, n_chunks)
        def _(c):
            r0 = c * 8
            for u in range(8):                      # partially unrolled issue loop
                r = r0 + u
                tok = tok_ref[row0 + r]
                pltpu.make_async_copy(
                    w_e_hbm.at[tok], emb_buf.at[slot_idx, r], sems.at[slot_idx]
                ).start()

    # Prime the gather pipeline at the first batch element of each pos-tile
    # sweep (b == 0 holds at the start of every j, also under megacore sharding
    # of the j axis, so this is safe with "parallel" on axis 0).
    @pl.when(b == 0)
    def _():
        issue_gather(0, 0)

    # Prefetch the NEXT batch element's rows into the other slot so their DMA
    # latency overlaps this step's compute and the auto-pipelined streams.
    @pl.when(b + 1 < n_b)
    def _():
        issue_gather(b + 1, 1 - slot)

    # ---- Positional + token-type contribution (does not need the gather). ----
    tt = tt_ref[...]                                   # (tile_pos, 1) in {0., 1.}
    wtt0 = w_tt_ref[0:1, :].astype(jnp.float32)        # (1, d_model)
    wtt1 = w_tt_ref[1:2, :].astype(jnp.float32)        # (1, d_model)
    base = w_pos_ref[...].astype(jnp.float32) + wtt0 + tt * (wtt1 - wtt0)

    # ---- Bulk wait for this step's gathered word-embedding rows.  All
    # tile_pos row copies were issued on sems[slot]; one wait whose descriptor
    # spans the whole slot (tile_pos * d_model * itemsize bytes) consumes
    # exactly their total.  Only (dst, sem) byte accounting matters for wait.
    pltpu.make_async_copy(emb_buf.at[slot], emb_buf.at[slot], sems.at[slot]).wait()

    x = emb_buf[slot].astype(jnp.float32) + base

    # ---- LayerNorm over d_model: single-pass stats + rsqrt (one EUP op). ----
    inv_d = 1.0 / x.shape[-1]                          # folded at trace time
    mean = jnp.sum(x, axis=-1, keepdims=True) * inv_d
    mean_sq = jnp.sum(x * x, axis=-1, keepdims=True) * inv_d
    var = jnp.maximum(mean_sq - mean * mean, 0.0)      # guard tiny negative rounding
    inv_scale = jax.lax.rsqrt(var + eps)
    y = (x - mean) * inv_scale * lnw_ref[...].astype(jnp.float32) \
        + lnb_ref[...].astype(jnp.float32)
    out_ref[...] = y.astype(out_ref.dtype)


def _pick_tiling(pos: int, cap: int) -> tuple:
    """Choose (tile_pos, n_tiles): tile_pos multiple of 8, tile_pos*n_tiles >= pos."""
    cap = max(8, (cap // 8) * 8)
    n_j = max(1, -(-pos // cap))
    if n_j == 1 and pos >= 16:
        n_j = 2                     # keep the megacore-parallel axis >= 2 (v7x)
    tile = ((-(-pos // n_j) + 7) // 8) * 8
    n_j = -(-pos // tile)
    return tile, n_j


def bert_embed(
    input_ids,            # [batch, pos] int
    token_type_ids,       # [batch, pos] int (or None -> zeros)
    W_E,                  # [d_vocab, d_model]
    W_pos,                # [n_ctx, d_model]
    W_token_type,         # [2, d_model]
    ln_w,                 # [d_model]
    ln_b,                 # [d_model]
    *, eps: float = 1e-5, out_dtype=None, tile_pos_cap: int = 512,
):
    batch, pos = input_ids.shape
    d_vocab, d_model = W_E.shape
    if out_dtype is None:
        out_dtype = W_E.dtype
    assert W_pos.shape[0] >= pos, "n_ctx must be >= pos"

    tile_pos, n_j = _pick_tiling(pos, tile_pos_cap)
    pos_padded = tile_pos * n_j
    rows = batch * pos_padded

    if token_type_ids is None:
        token_type_ids = jnp.zeros((batch, pos), jnp.int32)

    # Guard the data-dependent DMAs and the 2-row lerp against bad ids.
    input_ids = jnp.clip(input_ids.astype(jnp.int32), 0, d_vocab - 1)
    token_type_ids = jnp.clip(token_type_ids.astype(jnp.int32), 0, 1)

    w_pos_rows = W_pos[:pos]
    if pos_padded != pos:
        pad = pos_padded - pos
        input_ids = jnp.pad(input_ids, ((0, 0), (0, pad)))
        token_type_ids = jnp.pad(token_type_ids, ((0, 0), (0, pad)))
        w_pos_rows = jnp.pad(w_pos_rows, ((0, pad), (0, 0)))

    tok_flat = input_ids.reshape(rows)
    tt2d = token_type_ids.reshape(rows, 1).astype(jnp.float32)
    lnw2d = ln_w.reshape(1, d_model)
    lnb2d = ln_b.reshape(1, d_model)

    kernel = functools.partial(
        _bert_embed_kernel, pos_padded=pos_padded, tile_pos=tile_pos, eps=eps)

    # VMEM budget: double-buffered W_pos/out/tt streams + 2-slot gather scratch
    # + small tables.  Request ~2x that (plus slack), not a blanket 32-48 MiB.
    lane_pad = -(-d_model // 128) * 128
    bs = tile_pos * lane_pad
    est = (2 * bs * jnp.dtype(W_pos.dtype).itemsize      # W_pos stream (2 bufs)
           + 2 * bs * jnp.dtype(out_dtype).itemsize      # output stream (2 bufs)
           + 2 * bs * jnp.dtype(W_E.dtype).itemsize      # gather scratch (2 slots)
           + 2 * tile_pos * 128 * 4                      # token-type stream (lane-padded)
           + 8 * 8 * lane_pad * 4)                       # small tables (sublane-padded)
    vmem_limit = int(max(4 << 20, min(2 * est + (1 << 20), 64 << 20)))

    out2d = pl.pallas_call(
        kernel,
        out_shape=jax.ShapeDtypeStruct((rows, d_model), out_dtype),
        grid_spec=pltpu.PrefetchScalarGridSpec(
            num_scalar_prefetch=1,
            grid=(n_j, batch),   # batch innermost -> W_pos tile stays resident
            in_specs=[
                pl.BlockSpec(memory_space=pl.ANY),                                # W_E (HBM)
                pl.BlockSpec((tile_pos, d_model), lambda j, b, tok: (j, 0)),      # W_pos rows
                pl.BlockSpec((2, d_model), lambda j, b, tok: (0, 0)),             # W_token_type
                pl.BlockSpec((tile_pos, 1), lambda j, b, tok: (b * n_j + j, 0)),  # type ids
                pl.BlockSpec((1, d_model), lambda j, b, tok: (0, 0)),             # ln w
                pl.BlockSpec((1, d_model), lambda j, b, tok: (0, 0)),             # ln b
            ],
            out_specs=pl.BlockSpec(
                (tile_pos, d_model), lambda j, b, tok: (b * n_j + j, 0)),
            scratch_shapes=[
                pltpu.VMEM((2, tile_pos, d_model), W_E.dtype),   # double-buffered gather
                pltpu.SemaphoreType.DMA((2,)),                    # one shared sem per slot
            ],
        ),
        compiler_params=pltpu.CompilerParams(
            dimension_semantics=("parallel", "arbitrary"),
            vmem_limit_bytes=vmem_limit,
        ),
    )(tok_flat, W_E, w_pos_rows, W_token_type, tt2d, lnw2d, lnb2d)

    out = out2d.reshape(batch, pos_padded, d_model)
    if pos_padded != pos:
        out = out[:, :pos, :]
    return out


def bert_embed_reference(input_ids, token_type_ids, W_E, W_pos, W_tt, ln_w, ln_b,
                         *, eps=1e-5):
    batch, pos = input_ids.shape
    d_model = W_E.shape[1]
    if token_type_ids is None:
        token_type_ids = jnp.zeros_like(input_ids)
    word = W_E[input_ids]
    posemb = jnp.broadcast_to(W_pos[:pos][None, :, :], (batch, pos, d_model))
    tte = W_tt[token_type_ids]
    x = (word + posemb + tte).astype(jnp.float32)
    x = x - x.mean(-1, keepdims=True)
    scale = jnp.sqrt((x * x).mean(-1, keepdims=True) + eps)
    y = x / scale * ln_w.astype(jnp.float32) + ln_b.astype(jnp.float32)
    return y.astype(W_E.dtype)


if __name__ == "__main__":
    key = jax.random.PRNGKey(0)
    batch, pos = 2, 8
    d_vocab, n_ctx, d_model = 64, 16, 128
    eps = 1e-5

    k1, k2, k3, k4, k5, k6, k7 = jax.random.split(key, 7)
    input_ids = jax.random.randint(k1, (batch, pos), 0, d_vocab, dtype=jnp.int32)
    token_type_ids = jax.random.randint(k2, (batch, pos), 0, 2, dtype=jnp.int32)
    W_E = jax.random.normal(k3, (d_vocab, d_model), dtype=jnp.float32)
    W_pos = jax.random.normal(k4, (n_ctx, d_model), dtype=jnp.float32)
    W_tt = jax.random.normal(k5, (2, d_model), dtype=jnp.float32)
    ln_w = 1.0 + 0.1 * jax.random.normal(k6, (d_model,), dtype=jnp.float32)
    ln_b = 0.1 * jax.random.normal(k7, (d_model,), dtype=jnp.float32)

    out = bert_embed(input_ids, token_type_ids, W_E, W_pos, W_tt, ln_w, ln_b, eps=eps)
    out = jax.block_until_ready(out)

    ref = bert_embed_reference(input_ids, token_type_ids, W_E, W_pos, W_tt, ln_w, ln_b,
                               eps=eps)
    assert out.shape == ref.shape and out.dtype == ref.dtype
    max_err = float(jnp.max(jnp.abs(out - ref)))
    assert max_err < 1e-4, max_err

    print("KERNEL_OK")
</pallas_src>

<mosaic_0001>
module attributes {stable_mosaic.version = 11 : i64} {
  func.func @_bert_embed_kernel(%arg0: i32, %arg1: i32, %arg2: memref<16xi32, #tpu.memory_space<smem>>, %arg3: memref<64x128xf32, #tpu.memory_space<any>>, %arg4: memref<8x128xf32, #tpu.memory_space<vmem>>, %arg5: memref<2x128xf32, #tpu.memory_space<vmem>>, %arg6: memref<8x1xf32, #tpu.memory_space<vmem>>, %arg7: memref<1x128xf32, #tpu.memory_space<vmem>>, %arg8: memref<1x128xf32, #tpu.memory_space<vmem>>, %arg9: memref<8x128xf32, #tpu.memory_space<vmem>>, %arg10: memref<2x8x128xf32, #tpu.memory_space<vmem>>, %arg11: memref<2x!tpu.dma_semaphore, #tpu.memory_space<semaphore_mem>>) attributes {dimension_semantics = [#tpu.dimension_semantics<parallel>, #tpu.dimension_semantics<arbitrary>], iteration_bounds = array<i64: 1, 2>, scalar_prefetch = 1 : i64, scratch_operands = 2 : i64, tpu.core_type = #tpu.core_type<tc>, window_params = [{}, {transform_indices = @transform_1, window_bounds = array<i64: 8, 128>}, {pipeline_mode = #tpu.pipeline_mode<synchronous>, transform_indices = @transform_2, window_bounds = array<i64: 2, 128>}, {transform_indices = @transform_3, window_bounds = array<i64: 8, 1>}, {pipeline_mode = #tpu.pipeline_mode<synchronous>, transform_indices = @transform_4, window_bounds = array<i64: 1, 128>}, {pipeline_mode = #tpu.pipeline_mode<synchronous>, transform_indices = @transform_5, window_bounds = array<i64: 1, 128>}, {transform_indices = @transform_6, window_bounds = array<i64: 8, 128>}]} {
    %c2_i32 = arith.constant 2 : i32
    %c0_i32 = arith.constant 0 : i32
    %0 = arith.cmpi eq, %c2_i32, %c0_i32 : i32
    %c1_i32 = arith.constant 1 : i32
    %1 = arith.select %0, %c1_i32, %c2_i32 : i32
    %2 = arith.remsi %arg1, %1 : i32
    %c0_i32_0 = arith.constant 0 : i32
    %3 = arith.cmpi ne, %2, %c0_i32_0 : i32
    %c0_i32_1 = arith.constant 0 : i32
    %4 = arith.cmpi slt, %2, %c0_i32_1 : i32
    %c0_i32_2 = arith.constant 0 : i32
    %5 = arith.cmpi slt, %1, %c0_i32_2 : i32
    %6 = arith.xori %4, %5 : i1
    %7 = arith.andi %6, %3 : i1
    %8 = arith.addi %2, %1 : i32
    %9 = arith.select %7, %8, %2 : i32
    %c8_i32 = arith.constant 8 : i32
    %10 = arith.muli %arg0, %c8_i32 : i32
    %c0_i32_3 = arith.constant 0 : i32
    %11 = arith.cmpi eq, %arg1, %c0_i32_3 : i32
    %12 = arith.extui %11 : i1 to i32
    %c0_i32_4 = arith.constant 0 : i32
    %13 = arith.cmpi ne, %12, %c0_i32_4 : i32
    scf.if %13 {
      %c0_i32_31 = arith.constant 0 : i32
      %66 = arith.addi %c0_i32_31, %10 : i32
      %c0_i32_32 = arith.constant 0 : i32
      %c1_i32_33 = arith.constant 1 : i32
      %67 = arith.muli %c0_i32_32, %c1_i32_33 : i32
      %c0_i32_34 = arith.constant 0 : i32
      %68 = arith.addi %c0_i32_34, %67 : i32
      %c8_i32_35 = arith.constant 8 : i32
      %69 = arith.muli %68, %c8_i32_35 : i32
      %c0_i32_36 = arith.constant 0 : i32
      %70 = arith.addi %69, %c0_i32_36 : i32
      %71 = arith.addi %66, %70 : i32
      %72 = arith.index_cast %71 : i32 to index
      %73 = memref.load %arg2[%72] : memref<16xi32, #tpu.memory_space<smem>>
      %c0_i32_37 = arith.constant 0 : i32
      %c0_i32_38 = arith.constant 0 : i32
      %c0_i32_39 = arith.constant 0 : i32
      %74 = tpu.memref_slice %arg3[%73, %c0_i32_39] : memref<64x128xf32, #tpu.memory_space<any>> -> memref<1x128xf32, #tpu.memory_space<any>>
      %75 = tpu.memref_squeeze %74 : memref<1x128xf32, #tpu.memory_space<any>> -> memref<128xf32, #tpu.memory_space<any>>
      %c0_i32_40 = arith.constant 0 : i32
      %76 = tpu.memref_slice %arg10[%c0_i32_37, %70, %c0_i32_40] : memref<2x8x128xf32, #tpu.memory_space<vmem>> -> memref<1x1x128xf32, #tpu.memory_space<vmem>>
      %77 = tpu.memref_squeeze %76 : memref<1x1x128xf32, #tpu.memory_space<vmem>> -> memref<128xf32, #tpu.memory_space<vmem>>
      %78 = tpu.memref_slice %arg11[%c0_i32_38] : memref<2x!tpu.dma_semaphore, #tpu.memory_space<semaphore_mem>> -> memref<1x!tpu.dma_semaphore, #tpu.memory_space<semaphore_mem>>
      %79 = tpu.memref_squeeze %78 : memref<1x!tpu.dma_semaphore, #tpu.memory_space<semaphore_mem>> -> memref<!tpu.dma_semaphore, #tpu.memory_space<semaphore_mem>>
      tpu.enqueue_dma source(%75 : memref<128xf32, #tpu.memory_space<any>>) target(%77 : memref<128xf32, #tpu.memory_space<vmem>>) target_semaphore(%79 : memref<!tpu.dma_semaphore, #tpu.memory_space<semaphore_mem>>)
      %c1_i32_41 = arith.constant 1 : i32
      %80 = arith.addi %69, %c1_i32_41 : i32
      %81 = arith.addi %66, %80 : i32
      %82 = arith.index_cast %81 : i32 to index
      %83 = memref.load %arg2[%82] : memref<16xi32, #tpu.memory_space<smem>>
      %c0_i32_42 = arith.constant 0 : i32
      %c0_i32_43 = arith.constant 0 : i32
      %c0_i32_44 = arith.constant 0 : i32
      %84 = tpu.memref_slice %arg3[%83, %c0_i32_44] : memref<64x128xf32, #tpu.memory_space<any>> -> memref<1x128xf32, #tpu.memory_space<any>>
      %85 = tpu.memref_squeeze %84 : memref<1x128xf32, #tpu.memory_space<any>> -> memref<128xf32, #tpu.memory_space<any>>
      %c0_i32_45 = arith.constant 0 : i32
      %86 = tpu.memref_slice %arg10[%c0_i32_42, %80, %c0_i32_45] : memref<2x8x128xf32, #tpu.memory_space<vmem>> -> memref<1x1x128xf32, #tpu.memory_space<vmem>>
      %87 = tpu.memref_squeeze %86 : memref<1x1x128xf32, #tpu.memory_space<vmem>> -> memref<128xf32, #tpu.memory_space<vmem>>
      %88 = tpu.memref_slice %arg11[%c0_i32_43] : memref<2x!tpu.dma_semaphore, #tpu.memory_space<semaphore_mem>> -> memref<1x!tpu.dma_semaphore, #tpu.memory_space<semaphore_mem>>
      %89 = tpu.memref_squeeze %88 : memref<1x!tpu.dma_semaphore, #tpu.memory_space<semaphore_mem>> -> memref<!tpu.dma_semaphore, #tpu.memory_space<semaphore_mem>>
      tpu.enqueue_dma source(%85 : memref<128xf32, #tpu.memory_space<any>>) target(%87 : memref<128xf32, #tpu.memory_space<vmem>>) target_semaphore(%89 : memref<!tpu.dma_semaphore, #tpu.memory_space<semaphore_mem>>)
      %c2_i32_46 = arith.constant 2 : i32
      %90 = arith.addi %69, %c2_i32_46 : i32
      %91 = arith.addi %66, %90 : i32
      %92 = arith.index_cast %91 : i32 to index
      %93 = memref.load %arg2[%92] : memref<16xi32, #tpu.memory_space<smem>>
      %c0_i32_47 = arith.constant 0 : i32
      %c0_i32_48 = arith.constant 0 : i32
      %c0_i32_49 = arith.constant 0 : i32
      %94 = tpu.memref_slice %arg3[%93, %c0_i32_49] : memref<64x128xf32, #tpu.memory_space<any>> -> memref<1x128xf32, #tpu.memory_space<any>>
      %95 = tpu.memref_squeeze %94 : memref<1x128xf32, #tpu.memory_space<any>> -> memref<128xf32, #tpu.memory_space<any>>
      %c0_i32_50 = arith.constant 0 : i32
      %96 = tpu.memref_slice %arg10[%c0_i32_47, %90, %c0_i32_50] : memref<2x8x128xf32, #tpu.memory_space<vmem>> -> memref<1x1x128xf32, #tpu.memory_space<vmem>>
      %97 = tpu.memref_squeeze %96 : memref<1x1x128xf32, #tpu.memory_space<vmem>> -> memref<128xf32, #tpu.memory_space<vmem>>
      %98 = tpu.memref_slice %arg11[%c0_i32_48] : memref<2x!tpu.dma_semaphore, #tpu.memory_space<semaphore_mem>> -> memref<1x!tpu.dma_semaphore, #tpu.memory_space<semaphore_mem>>
      %99 = tpu.memref_squeeze %98 : memref<1x!tpu.dma_semaphore, #tpu.memory_space<semaphore_mem>> -> memref<!tpu.dma_semaphore, #tpu.memory_space<semaphore_mem>>
      tpu.enqueue_dma source(%95 : memref<128xf32, #tpu.memory_space<any>>) target(%97 : memref<128xf32, #tpu.memory_space<vmem>>) target_semaphore(%99 : memref<!tpu.dma_semaphore, #tpu.memory_space<semaphore_mem>>)
      %c3_i32 = arith.constant 3 : i32
      %100 = arith.addi %69, %c3_i32 : i32
      %101 = arith.addi %66, %100 : i32
      %102 = arith.index_cast %101 : i32 to index
      %103 = memref.load %arg2[%102] : memref<16xi32, #tpu.memory_space<smem>>
      %c0_i32_51 = arith.constant 0 : i32
      %c0_i32_52 = arith.constant 0 : i32
      %c0_i32_53 = arith.constant 0 : i32
      %104 = tpu.memref_slice %arg3[%103, %c0_i32_53] : memref<64x128xf32, #tpu.memory_space<any>> -> memref<1x128xf32, #tpu.memory_space<any>>
      %105 = tpu.memref_squeeze %104 : memref<1x128xf32, #tpu.memory_space<any>> -> memref<128xf32, #tpu.memory_space<any>>
      %c0_i32_54 = arith.constant 0 : i32
      %106 = tpu.memref_slice %arg10[%c0_i32_51, %100, %c0_i32_54] : memref<2x8x128xf32, #tpu.memory_space<vmem>> -> memref<1x1x128xf32, #tpu.memory_space<vmem>>
      %107 = tpu.memref_squeeze %106 : memref<1x1x128xf32, #tpu.memory_space<vmem>> -> memref<128xf32, #tpu.memory_space<vmem>>
      %108 = tpu.memref_slice %arg11[%c0_i32_52] : memref<2x!tpu.dma_semaphore, #tpu.memory_space<semaphore_mem>> -> memref<1x!tpu.dma_semaphore, #tpu.memory_space<semaphore_mem>>
      %109 = tpu.memref_squeeze %108 : memref<1x!tpu.dma_semaphore, #tpu.memory_space<semaphore_mem>> -> memref<!tpu.dma_semaphore, #tpu.memory_space<semaphore_mem>>
      tpu.enqueue_dma source(%105 : memref<128xf32, #tpu.memory_space<any>>) target(%107 : memref<128xf32, #tpu.memory_space<vmem>>) target_semaphore(%109 : memref<!tpu.dma_semaphore, #tpu.memory_space<semaphore_mem>>)
      %c4_i32 = arith.constant 4 : i32
      %110 = arith.addi %69, %c4_i32 : i32
      %111 = arith.addi %66, %110 : i32
      %112 = arith.index_cast %111 : i32 to index
      %113 = memref.load %arg2[%112] : memref<16xi32, #tpu.memory_space<smem>>
      %c0_i32_55 = arith.constant 0 : i32
      %c0_i32_56 = arith.constant 0 : i32
      %c0_i32_57 = arith.constant 0 : i32
      %114 = tpu.memref_slice %arg3[%113, %c0_i32_57] : memref<64x128xf32, #tpu.memory_space<any>> -> memref<1x128xf32, #tpu.memory_space<any>>
      %115 = tpu.memref_squeeze %114 : memref<1x128xf32, #tpu.memory_space<any>> -> memref<128xf32, #tpu.memory_space<any>>
      %c0_i32_58 = arith.constant 0 : i32
      %116 = tpu.memref_slice %arg10[%c0_i32_55, %110, %c0_i32_58] : memref<2x8x128xf32, #tpu.memory_space<vmem>> -> memref<1x1x128xf32, #tpu.memory_space<vmem>>
      %117 = tpu.memref_squeeze %116 : memref<1x1x128xf32, #tpu.memory_space<vmem>> -> memref<128xf32, #tpu.memory_space<vmem>>
      %118 = tpu.memref_slice %arg11[%c0_i32_56] : memref<2x!tpu.dma_semaphore, #tpu.memory_space<semaphore_mem>> -> memref<1x!tpu.dma_semaphore, #tpu.memory_space<semaphore_mem>>
      %119 = tpu.memref_squeeze %118 : memref<1x!tpu.dma_semaphore, #tpu.memory_space<semaphore_mem>> -> memref<!tpu.dma_semaphore, #tpu.memory_space<semaphore_mem>>
      tpu.enqueue_dma source(%115 : memref<128xf32, #tpu.memory_space<any>>) target(%117 : memref<128xf32, #tpu.memory_space<vmem>>) target_semaphore(%119 : memref<!tpu.dma_semaphore, #tpu.memory_space<semaphore_mem>>)
      %c5_i32 = arith.constant 5 : i32
      %120 = arith.addi %69, %c5_i32 : i32
      %121 = arith.addi %66, %120 : i32
      %122 = arith.index_cast %121 : i32 to index
      %123 = memref.load %arg2[%122] : memref<16xi32, #tpu.memory_space<smem>>
      %c0_i32_59 = arith.constant 0 : i32
      %c0_i32_60 = arith.constant 0 : i32
      %c0_i32_61 = arith.constant 0 : i32
      %124 = tpu.memref_slice %arg3[%123, %c0_i32_61] : memref<64x128xf32, #tpu.memory_space<any>> -> memref<1x128xf32, #tpu.memory_space<any>>
      %125 = tpu.memref_squeeze %124 : memref<1x128xf32, #tpu.memory_space<any>> -> memref<128xf32, #tpu.memory_space<any>>
      %c0_i32_62 = arith.constant 0 : i32
      %126 = tpu.memref_slice %arg10[%c0_i32_59, %120, %c0_i32_62] : memref<2x8x128xf32, #tpu.memory_space<vmem>> -> memref<1x1x128xf32, #tpu.memory_space<vmem>>
      %127 = tpu.memref_squeeze %126 : memref<1x1x128xf32, #tpu.memory_space<vmem>> -> memref<128xf32, #tpu.memory_space<vmem>>
      %128 = tpu.memref_slice %arg11[%c0_i32_60] : memref<2x!tpu.dma_semaphore, #tpu.memory_space<semaphore_mem>> -> memref<1x!tpu.dma_semaphore, #tpu.memory_space<semaphore_mem>>
      %129 = tpu.memref_squeeze %128 : memref<1x!tpu.dma_semaphore, #tpu.memory_space<semaphore_mem>> -> memref<!tpu.dma_semaphore, #tpu.memory_space<semaphore_mem>>
      tpu.enqueue_dma source(%125 : memref<128xf32, #tpu.memory_space<any>>) target(%127 : memref<128xf32, #tpu.memory_space<vmem>>) target_semaphore(%129 : memref<!tpu.dma_semaphore, #tpu.memory_space<semaphore_mem>>)
      %c6_i32 = arith.constant 6 : i32
      %130 = arith.addi %69, %c6_i32 : i32
      %131 = arith.addi %66, %130 : i32
      %132 = arith.index_cast %131 : i32 to index
      %133 = memref.load %arg2[%132] : memref<16xi32, #tpu.memory_space<smem>>
      %c0_i32_63 = arith.constant 0 : i32
      %c0_i32_64 = arith.constant 0 : i32
      %c0_i32_65 = arith.constant 0 : i32
      %134 = tpu.memref_slice %arg3[%133, %c0_i32_65] : memref<64x128xf32, #tpu.memory_space<any>> -> memref<1x128xf32, #tpu.memory_space<any>>
      %135 = tpu.memref_squeeze %134 : memref<1x128xf32, #tpu.memory_space<any>> -> memref<128xf32, #tpu.memory_space<any>>
      %c0_i32_66 = arith.constant 0 : i32
      %136 = tpu.memref_slice %arg10[%c0_i32_63, %130, %c0_i32_66] : memref<2x8x128xf32, #tpu.memory_space<vmem>> -> memref<1x1x128xf32, #tpu.memory_space<vmem>>
      %137 = tpu.memref_squeeze %136 : memref<1x1x128xf32, #tpu.memory_space<vmem>> -> memref<128xf32, #tpu.memory_space<vmem>>
      %138 = tpu.memref_slice %arg11[%c0_i32_64] : memref<2x!tpu.dma_semaphore, #tpu.memory_space<semaphore_mem>> -> memref<1x!tpu.dma_semaphore, #tpu.memory_space<semaphore_mem>>
      %139 = tpu.memref_squeeze %138 : memref<1x!tpu.dma_semaphore, #tpu.memory_space<semaphore_mem>> -> memref<!tpu.dma_semaphore, #tpu.memory_space<semaphore_mem>>
      tpu.enqueue_dma source(%135 : memref<128xf32, #tpu.memory_space<any>>) target(%137 : memref<128xf32, #tpu.memory_space<vmem>>) target_semaphore(%139 : memref<!tpu.dma_semaphore, #tpu.memory_space<semaphore_mem>>)
      %c7_i32 = arith.constant 7 : i32
      %140 = arith.addi %69, %c7_i32 : i32
      %141 = arith.addi %66, %140 : i32
      %142 = arith.index_cast %141 : i32 to index
      %143 = memref.load %arg2[%142] : memref<16xi32, #tpu.memory_space<smem>>
      %c0_i32_67 = arith.constant 0 : i32
      %c0_i32_68 = arith.constant 0 : i32
      %c0_i32_69 = arith.constant 0 : i32
      %144 = tpu.memref_slice %arg3[%143, %c0_i32_69] : memref<64x128xf32, #tpu.memory_space<any>> -> memref<1x128xf32, #tpu.memory_space<any>>
      %145 = tpu.memref_squeeze %144 : memref<1x128xf32, #tpu.memory_space<any>> -> memref<128xf32, #tpu.memory_space<any>>
      %c0_i32_70 = arith.constant 0 : i32
      %146 = tpu.memref_slice %arg10[%c0_i32_67, %140, %c0_i32_70] : memref<2x8x128xf32, #tpu.memory_space<vmem>> -> memref<1x1x128xf32, #tpu.memory_space<vmem>>
      %147 = tpu.memref_squeeze %146 : memref<1x1x128xf32, #tpu.memory_space<vmem>> -> memref<128xf32, #tpu.memory_space<vmem>>
      %148 = tpu.memref_slice %arg11[%c0_i32_68] : memref<2x!tpu.dma_semaphore, #tpu.memory_space<semaphore_mem>> -> memref<1x!tpu.dma_semaphore, #tpu.memory_space<semaphore_mem>>
      %149 = tpu.memref_squeeze %148 : memref<1x!tpu.dma_semaphore, #tpu.memory_space<semaphore_mem>> -> memref<!tpu.dma_semaphore, #tpu.memory_space<semaphore_mem>>
      tpu.enqueue_dma source(%145 : memref<128xf32, #tpu.memory_space<any>>) target(%147 : memref<128xf32, #tpu.memory_space<vmem>>) target_semaphore(%149 : memref<!tpu.dma_semaphore, #tpu.memory_space<semaphore_mem>>)
      %c1_i32_71 = arith.constant 1 : i32
    } else {
    }
    %c1_i32_5 = arith.constant 1 : i32
    %14 = arith.addi %arg1, %c1_i32_5 : i32
    %c2_i32_6 = arith.constant 2 : i32
    %15 = arith.cmpi slt, %14, %c2_i32_6 : i32
    %16 = arith.extui %15 : i1 to i32
    %c0_i32_7 = arith.constant 0 : i32
    %17 = arith.cmpi ne, %16, %c0_i32_7 : i32
    scf.if %17 {
      %c1_i32_31 = arith.constant 1 : i32
      %66 = arith.addi %arg1, %c1_i32_31 : i32
      %c1_i32_32 = arith.constant 1 : i32
      %67 = arith.subi %c1_i32_32, %9 : i32
      %c8_i32_33 = arith.constant 8 : i32
      %68 = arith.muli %66, %c8_i32_33 : i32
      %69 = arith.addi %68, %10 : i32
      %c0_i32_34 = arith.constant 0 : i32
      %c1_i32_35 = arith.constant 1 : i32
      %70 = arith.muli %c0_i32_34, %c1_i32_35 : i32
      %c0_i32_36 = arith.constant 0 : i32
      %71 = arith.addi %c0_i32_36, %70 : i32
      %c8_i32_37 = arith.constant 8 : i32
      %72 = arith.muli %71, %c8_i32_37 : i32
      %c0_i32_38 = arith.constant 0 : i32
      %73 = arith.addi %72, %c0_i32_38 : i32
      %74 = arith.addi %69, %73 : i32
      %75 = arith.index_cast %74 : i32 to index
      %76 = memref.load %arg2[%75] : memref<16xi32, #tpu.memory_space<smem>>
      %c0_i32_39 = arith.constant 0 : i32
      %77 = tpu.memref_slice %arg3[%76, %c0_i32_39] : memref<64x128xf32, #tpu.memory_space<any>> -> memref<1x128xf32, #tpu.memory_space<any>>
      %78 = tpu.memref_squeeze %77 : memref<1x128xf32, #tpu.memory_space<any>> -> memref<128xf32, #tpu.memory_space<any>>
      %c0_i32_40 = arith.constant 0 : i32
      %79 = tpu.memref_slice %arg10[%67, %73, %c0_i32_40] : memref<2x8x128xf32, #tpu.memory_space<vmem>> -> memref<1x1x128xf32, #tpu.memory_space<vmem>>
      %80 = tpu.memref_squeeze %79 : memref<1x1x128xf32, #tpu.memory_space<vmem>> -> memref<128xf32, #tpu.memory_space<vmem>>
      %81 = tpu.memref_slice %arg11[%67] : memref<2x!tpu.dma_semaphore, #tpu.memory_space<semaphore_mem>> -> memref<1x!tpu.dma_semaphore, #tpu.memory_space<semaphore_mem>>
      %82 = tpu.memref_squeeze %81 : memref<1x!tpu.dma_semaphore, #tpu.memory_space<semaphore_mem>> -> memref<!tpu.dma_semaphore, #tpu.memory_space<semaphore_mem>>
      tpu.enqueue_dma source(%78 : memref<128xf32, #tpu.memory_space<any>>) target(%80 : memref<128xf32, #tpu.memory_space<vmem>>) target_semaphore(%82 : memref<!tpu.dma_semaphore, #tpu.memory_space<semaphore_mem>>)
      %c1_i32_41 = arith.constant 1 : i32
      %83 = arith.addi %72, %c1_i32_41 : i32
      %84 = arith.addi %69, %83 : i32
      %85 = arith.index_cast %84 : i32 to index
      %86 = memref.load %arg2[%85] : memref<16xi32, #tpu.memory_space<smem>>
      %c0_i32_42 = arith.constant 0 : i32
      %87 = tpu.memref_slice %arg3[%86, %c0_i32_42] : memref<64x128xf32, #tpu.memory_space<any>> -> memref<1x128xf32, #tpu.memory_space<any>>
      %88 = tpu.memref_squeeze %87 : memref<1x128xf32, #tpu.memory_space<any>> -> memref<128xf32, #tpu.memory_space<any>>
      %c0_i32_43 = arith.constant 0 : i32
      %89 = tpu.memref_slice %arg10[%67, %83, %c0_i32_43] : memref<2x8x128xf32, #tpu.memory_space<vmem>> -> memref<1x1x128xf32, #tpu.memory_space<vmem>>
      %90 = tpu.memref_squeeze %89 : memref<1x1x128xf32, #tpu.memory_space<vmem>> -> memref<128xf32, #tpu.memory_space<vmem>>
      %91 = tpu.memref_slice %arg11[%67] : memref<2x!tpu.dma_semaphore, #tpu.memory_space<semaphore_mem>> -> memref<1x!tpu.dma_semaphore, #tpu.memory_space<semaphore_mem>>
      %92 = tpu.memref_squeeze %91 : memref<1x!tpu.dma_semaphore, #tpu.memory_space<semaphore_mem>> -> memref<!tpu.dma_semaphore, #tpu.memory_space<semaphore_mem>>
      tpu.enqueue_dma source(%88 : memref<128xf32, #tpu.memory_space<any>>) target(%90 : memref<128xf32, #tpu.memory_space<vmem>>) target_semaphore(%92 : memref<!tpu.dma_semaphore, #tpu.memory_space<semaphore_mem>>)
      %c2_i32_44 = arith.constant 2 : i32
      %93 = arith.addi %72, %c2_i32_44 : i32
      %94 = arith.addi %69, %93 : i32
      %95 = arith.index_cast %94 : i32 to index
      %96 = memref.load %arg2[%95] : memref<16xi32, #tpu.memory_space<smem>>
      %c0_i32_45 = arith.constant 0 : i32
      %97 = tpu.memref_slice %arg3[%96, %c0_i32_45] : memref<64x128xf32, #tpu.memory_space<any>> -> memref<1x128xf32, #tpu.memory_space<any>>
      %98 = tpu.memref_squeeze %97 : memref<1x128xf32, #tpu.memory_space<any>> -> memref<128xf32, #tpu.memory_space<any>>
      %c0_i32_46 = arith.constant 0 : i32
      %99 = tpu.memref_slice %arg10[%67, %93, %c0_i32_46] : memref<2x8x128xf32, #tpu.memory_space<vmem>> -> memref<1x1x128xf32, #tpu.memory_space<vmem>>
      %100 = tpu.memref_squeeze %99 : memref<1x1x128xf32, #tpu.memory_space<vmem>> -> memref<128xf32, #tpu.memory_space<vmem>>
      %101 = tpu.memref_slice %arg11[%67] : memref<2x!tpu.dma_semaphore, #tpu.memory_space<semaphore_mem>> -> memref<1x!tpu.dma_semaphore, #tpu.memory_space<semaphore_mem>>
      %102 = tpu.memref_squeeze %101 : memref<1x!tpu.dma_semaphore, #tpu.memory_space<semaphore_mem>> -> memref<!tpu.dma_semaphore, #tpu.memory_space<semaphore_mem>>
      tpu.enqueue_dma source(%98 : memref<128xf32, #tpu.memory_space<any>>) target(%100 : memref<128xf32, #tpu.memory_space<vmem>>) target_semaphore(%102 : memref<!tpu.dma_semaphore, #tpu.memory_space<semaphore_mem>>)
      %c3_i32 = arith.constant 3 : i32
      %103 = arith.addi %72, %c3_i32 : i32
      %104 = arith.addi %69, %103 : i32
      %105 = arith.index_cast %104 : i32 to index
      %106 = memref.load %arg2[%105] : memref<16xi32, #tpu.memory_space<smem>>
      %c0_i32_47 = arith.constant 0 : i32
      %107 = tpu.memref_slice %arg3[%106, %c0_i32_47] : memref<64x128xf32, #tpu.memory_space<any>> -> memref<1x128xf32, #tpu.memory_space<any>>
      %108 = tpu.memref_squeeze %107 : memref<1x128xf32, #tpu.memory_space<any>> -> memref<128xf32, #tpu.memory_space<any>>
      %c0_i32_48 = arith.constant 0 : i32
      %109 = tpu.memref_slice %arg10[%67, %103, %c0_i32_48] : memref<2x8x128xf32, #tpu.memory_space<vmem>> -> memref<1x1x128xf32, #tpu.memory_space<vmem>>
      %110 = tpu.memref_squeeze %109 : memref<1x1x128xf32, #tpu.memory_space<vmem>> -> memref<128xf32, #tpu.memory_space<vmem>>
      %111 = tpu.memref_slice %arg11[%67] : memref<2x!tpu.dma_semaphore, #tpu.memory_space<semaphore_mem>> -> memref<1x!tpu.dma_semaphore, #tpu.memory_space<semaphore_mem>>
      %112 = tpu.memref_squeeze %111 : memref<1x!tpu.dma_semaphore, #tpu.memory_space<semaphore_mem>> -> memref<!tpu.dma_semaphore, #tpu.memory_space<semaphore_mem>>
      tpu.enqueue_dma source(%108 : memref<128xf32, #tpu.memory_space<any>>) target(%110 : memref<128xf32, #tpu.memory_space<vmem>>) target_semaphore(%112 : memref<!tpu.dma_semaphore, #tpu.memory_space<semaphore_mem>>)
      %c4_i32 = arith.constant 4 : i32
      %113 = arith.addi %72, %c4_i32 : i32
      %114 = arith.addi %69, %113 : i32
      %115 = arith.index_cast %114 : i32 to index
      %116 = memref.load %arg2[%115] : memref<16xi32, #tpu.memory_space<smem>>
      %c0_i32_49 = arith.constant 0 : i32
      %117 = tpu.memref_slice %arg3[%116, %c0_i32_49] : memref<64x128xf32, #tpu.memory_space<any>> -> memref<1x128xf32, #tpu.memory_space<any>>
      %118 = tpu.memref_squeeze %117 : memref<1x128xf32, #tpu.memory_space<any>> -> memref<128xf32, #tpu.memory_space<any>>
      %c0_i32_50 = arith.constant 0 : i32
      %119 = tpu.memref_slice %arg10[%67, %113, %c0_i32_50] : memref<2x8x128xf32, #tpu.memory_space<vmem>> -> memref<1x1x128xf32, #tpu.memory_space<vmem>>
      %120 = tpu.memref_squeeze %119 : memref<1x1x128xf32, #tpu.memory_space<vmem>> -> memref<128xf32, #tpu.memory_space<vmem>>
      %121 = tpu.memref_slice %arg11[%67] : memref<2x!tpu.dma_semaphore, #tpu.memory_space<semaphore_mem>> -> memref<1x!tpu.dma_semaphore, #tpu.memory_space<semaphore_mem>>
      %122 = tpu.memref_squeeze %121 : memref<1x!tpu.dma_semaphore, #tpu.memory_space<semaphore_mem>> -> memref<!tpu.dma_semaphore, #tpu.memory_space<semaphore_mem>>
      tpu.enqueue_dma source(%118 : memref<128xf32, #tpu.memory_space<any>>) target(%120 : memref<128xf32, #tpu.memory_space<vmem>>) target_semaphore(%122 : memref<!tpu.dma_semaphore, #tpu.memory_space<semaphore_mem>>)
      %c5_i32 = arith.constant 5 : i32
      %123 = arith.addi %72, %c5_i32 : i32
      %124 = arith.addi %69, %123 : i32
      %125 = arith.index_cast %124 : i32 to index
      %126 = memref.load %arg2[%125] : memref<16xi32, #tpu.memory_space<smem>>
      %c0_i32_51 = arith.constant 0 : i32
      %127 = tpu.memref_slice %arg3[%126, %c0_i32_51] : memref<64x128xf32, #tpu.memory_space<any>> -> memref<1x128xf32, #tpu.memory_space<any>>
      %128 = tpu.memref_squeeze %127 : memref<1x128xf32, #tpu.memory_space<any>> -> memref<128xf32, #tpu.memory_space<any>>
      %c0_i32_52 = arith.constant 0 : i32
      %129 = tpu.memref_slice %arg10[%67, %123, %c0_i32_52] : memref<2x8x128xf32, #tpu.memory_space<vmem>> -> memref<1x1x128xf32, #tpu.memory_space<vmem>>
      %130 = tpu.memref_squeeze %129 : memref<1x1x128xf32, #tpu.memory_space<vmem>> -> memref<128xf32, #tpu.memory_space<vmem>>
      %131 = tpu.memref_slice %arg11[%67] : memref<2x!tpu.dma_semaphore, #tpu.memory_space<semaphore_mem>> -> memref<1x!tpu.dma_semaphore, #tpu.memory_space<semaphore_mem>>
      %132 = tpu.memref_squeeze %131 : memref<1x!tpu.dma_semaphore, #tpu.memory_space<semaphore_mem>> -> memref<!tpu.dma_semaphore, #tpu.memory_space<semaphore_mem>>
      tpu.enqueue_dma source(%128 : memref<128xf32, #tpu.memory_space<any>>) target(%130 : memref<128xf32, #tpu.memory_space<vmem>>) target_semaphore(%132 : memref<!tpu.dma_semaphore, #tpu.memory_space<semaphore_mem>>)
      %c6_i32 = arith.constant 6 : i32
      %133 = arith.addi %72, %c6_i32 : i32
      %134 = arith.addi %69, %133 : i32
      %135 = arith.index_cast %134 : i32 to index
      %136 = memref.load %arg2[%135] : memref<16xi32, #tpu.memory_space<smem>>
      %c0_i32_53 = arith.constant 0 : i32
      %137 = tpu.memref_slice %arg3[%136, %c0_i32_53] : memref<64x128xf32, #tpu.memory_space<any>> -> memref<1x128xf32, #tpu.memory_space<any>>
      %138 = tpu.memref_squeeze %137 : memref<1x128xf32, #tpu.memory_space<any>> -> memref<128xf32, #tpu.memory_space<any>>
      %c0_i32_54 = arith.constant 0 : i32
      %139 = tpu.memref_slice %arg10[%67, %133, %c0_i32_54] : memref<2x8x128xf32, #tpu.memory_space<vmem>> -> memref<1x1x128xf32, #tpu.memory_space<vmem>>
      %140 = tpu.memref_squeeze %139 : memref<1x1x128xf32, #tpu.memory_space<vmem>> -> memref<128xf32, #tpu.memory_space<vmem>>
      %141 = tpu.memref_slice %arg11[%67] : memref<2x!tpu.dma_semaphore, #tpu.memory_space<semaphore_mem>> -> memref<1x!tpu.dma_semaphore, #tpu.memory_space<semaphore_mem>>
      %142 = tpu.memref_squeeze %141 : memref<1x!tpu.dma_semaphore, #tpu.memory_space<semaphore_mem>> -> memref<!tpu.dma_semaphore, #tpu.memory_space<semaphore_mem>>
      tpu.enqueue_dma source(%138 : memref<128xf32, #tpu.memory_space<any>>) target(%140 : memref<128xf32, #tpu.memory_space<vmem>>) target_semaphore(%142 : memref<!tpu.dma_semaphore, #tpu.memory_space<semaphore_mem>>)
      %c7_i32 = arith.constant 7 : i32
      %143 = arith.addi %72, %c7_i32 : i32
      %144 = arith.addi %69, %143 : i32
      %145 = arith.index_cast %144 : i32 to index
      %146 = memref.load %arg2[%145] : memref<16xi32, #tpu.memory_space<smem>>
      %c0_i32_55 = arith.constant 0 : i32
      %147 = tpu.memref_slice %arg3[%146, %c0_i32_55] : memref<64x128xf32, #tpu.memory_space<any>> -> memref<1x128xf32, #tpu.memory_space<any>>
      %148 = tpu.memref_squeeze %147 : memref<1x128xf32, #tpu.memory_space<any>> -> memref<128xf32, #tpu.memory_space<any>>
      %c0_i32_56 = arith.constant 0 : i32
      %149 = tpu.memref_slice %arg10[%67, %143, %c0_i32_56] : memref<2x8x128xf32, #tpu.memory_space<vmem>> -> memref<1x1x128xf32, #tpu.memory_space<vmem>>
      %150 = tpu.memref_squeeze %149 : memref<1x1x128xf32, #tpu.memory_space<vmem>> -> memref<128xf32, #tpu.memory_space<vmem>>
      %151 = tpu.memref_slice %arg11[%67] : memref<2x!tpu.dma_semaphore, #tpu.memory_space<semaphore_mem>> -> memref<1x!tpu.dma_semaphore, #tpu.memory_space<semaphore_mem>>
      %152 = tpu.memref_squeeze %151 : memref<1x!tpu.dma_semaphore, #tpu.memory_space<semaphore_mem>> -> memref<!tpu.dma_semaphore, #tpu.memory_space<semaphore_mem>>
      tpu.enqueue_dma source(%148 : memref<128xf32, #tpu.memory_space<any>>) target(%150 : memref<128xf32, #tpu.memory_space<vmem>>) target_semaphore(%152 : memref<!tpu.dma_semaphore, #tpu.memory_space<semaphore_mem>>)
      %c1_i32_57 = arith.constant 1 : i32
    } else {
    }
    %c0 = arith.constant 0 : index
    %c0_8 = arith.constant 0 : index
    %18 = vector.load %arg6[%c0, %c0_8] : memref<8x1xf32, #tpu.memory_space<vmem>>, vector<8x1xf32>
    %c0_9 = arith.constant 0 : index
    %c0_10 = arith.constant 0 : index
    %19 = vector.load %arg5[%c0_9, %c0_10] : memref<2x128xf32, #tpu.memory_space<vmem>>, vector<1x128xf32>
    %c1 = arith.constant 1 : index
    %c0_11 = arith.constant 0 : index
    %20 = vector.load %arg5[%c1, %c0_11] : memref<2x128xf32, #tpu.memory_space<vmem>>, vector<1x128xf32>
    %c0_12 = arith.constant 0 : index
    %c0_13 = arith.constant 0 : index
    %21 = vector.load %arg4[%c0_12, %c0_13] : memref<8x128xf32, #tpu.memory_space<vmem>>, vector<8x128xf32>
    %22 = vector.broadcast %19 : vector<1x128xf32> to vector<8x128xf32>
    %23 = arith.addf %21, %22 : vector<8x128xf32>
    %24 = arith.subf %20, %19 : vector<1x128xf32>
    %25 = vector.broadcast %18 : vector<8x1xf32> to vector<8x128xf32>
    %26 = vector.broadcast %24 : vector<1x128xf32> to vector<8x128xf32>
    %27 = arith.mulf %25, %26 : vector<8x128xf32>
    %28 = arith.addf %23, %27 : vector<8x128xf32>
    %c0_i32_14 = arith.constant 0 : i32
    %c0_i32_15 = arith.constant 0 : i32
    %29 = tpu.memref_slice %arg10[%9, %c0_i32_14, %c0_i32_15] : memref<2x8x128xf32, #tpu.memory_space<vmem>> -> memref<1x8x128xf32, #tpu.memory_space<vmem>>
    %30 = tpu.memref_squeeze %29 : memref<1x8x128xf32, #tpu.memory_space<vmem>> -> memref<8x128xf32, #tpu.memory_space<vmem>>
    %c0_i32_16 = arith.constant 0 : i32
    %c0_i32_17 = arith.constant 0 : i32
    %31 = tpu.memref_slice %arg10[%9, %c0_i32_16, %c0_i32_17] : memref<2x8x128xf32, #tpu.memory_space<vmem>> -> memref<1x8x128xf32, #tpu.memory_space<vmem>>
    %32 = tpu.memref_squeeze %31 : memref<1x8x128xf32, #tpu.memory_space<vmem>> -> memref<8x128xf32, #tpu.memory_space<vmem>>
    %33 = tpu.memref_slice %arg11[%9] : memref<2x!tpu.dma_semaphore, #tpu.memory_space<semaphore_mem>> -> memref<1x!tpu.dma_semaphore, #tpu.memory_space<semaphore_mem>>
    %34 = tpu.memref_squeeze %33 : memref<1x!tpu.dma_semaphore, #tpu.memory_space<semaphore_mem>> -> memref<!tpu.dma_semaphore, #tpu.memory_space<semaphore_mem>>
    tpu.wait_dma2 semaphore(%34 : memref<!tpu.dma_semaphore, #tpu.memory_space<semaphore_mem>>) src(%30 : memref<8x128xf32, #tpu.memory_space<vmem>>) dst(%32 : memref<8x128xf32, #tpu.memory_space<vmem>>)
    %35 = arith.index_cast %9 : i32 to index
    %c0_18 = arith.constant 0 : index
    %c0_19 = arith.constant 0 : index
    %36 = vector.load %arg10[%35, %c0_18, %c0_19] : memref<2x8x128xf32, #tpu.memory_space<vmem>>, vector<1x8x128xf32>
    %37 = vector.shape_cast %36 : vector<1x8x128xf32> to vector<8x128xf32>
    %38 = arith.addf %37, %28 : vector<8x128xf32>
    %cst = arith.constant dense<0.000000e+00> : vector<8xf32>
    %39 = vector.multi_reduction <add>, %38, %cst [1] : vector<8x128xf32> to vector<8xf32>
    %40 = vector.shape_cast %39 : vector<8xf32> to vector<8x1xf32>
    %cst_20 = arith.constant 7.812500e-03 : f32
    %41 = vector.broadcast %cst_20 : f32 to vector<8x1xf32>
    %42 = arith.mulf %40, %41 : vector<8x1xf32>
    %43 = arith.mulf %38, %38 : vector<8x128xf32>
    %cst_21 = arith.constant dense<0.000000e+00> : vector<8xf32>
    %44 = vector.multi_reduction <add>, %43, %cst_21 [1] : vector<8x128xf32> to vector<8xf32>
    %45 = vector.shape_cast %44 : vector<8xf32> to vector<8x1xf32>
    %cst_22 = arith.constant 7.812500e-03 : f32
    %46 = vector.broadcast %cst_22 : f32 to vector<8x1xf32>
    %47 = arith.mulf %45, %46 : vector<8x1xf32>
    %48 = arith.mulf %42, %42 : vector<8x1xf32>
    %49 = arith.subf %47, %48 : vector<8x1xf32>
    %cst_23 = arith.constant 0.000000e+00 : f32
    %50 = vector.broadcast %cst_23 : f32 to vector<8x1xf32>
    %51 = arith.maximumf %49, %50 : vector<8x1xf32>
    %cst_24 = arith.constant 9.99999974E-6 : f32
    %52 = vector.broadcast %cst_24 : f32 to vector<8x1xf32>
    %53 = arith.addf %51, %52 : vector<8x1xf32>
    %54 = math.rsqrt %53 : vector<8x1xf32>
    %55 = vector.broadcast %42 : vector<8x1xf32> to vector<8x128xf32>
    %56 = arith.subf %38, %55 : vector<8x128xf32>
    %57 = vector.broadcast %54 : vector<8x1xf32> to vector<8x128xf32>
    %58 = arith.mulf %56, %57 : vector<8x128xf32>
    %c0_25 = arith.constant 0 : index
    %c0_26 = arith.constant 0 : index
    %59 = vector.load %arg7[%c0_25, %c0_26] : memref<1x128xf32, #tpu.memory_space<vmem>>, vector<1x128xf32>
    %60 = vector.broadcast %59 : vector<1x128xf32> to vector<8x128xf32>
    %61 = arith.mulf %58, %60 : vector<8x128xf32>
    %c0_27 = arith.constant 0 : index
    %c0_28 = arith.constant 0 : index
    %62 = vector.load %arg8[%c0_27, %c0_28] : memref<1x128xf32, #tpu.memory_space<vmem>>, vector<1x128xf32>
    %63 = vector.broadcast %62 : vector<1x128xf32> to vector<8x128xf32>
    %64 = arith.addf %61, %63 : vector<8x128xf32>
    %c0_29 = arith.constant 0 : index
    %c0_30 = arith.constant 0 : index
    %65 = vector.load %arg9[%c0_29, %c0_30] : memref<8x128xf32, #tpu.memory_space<vmem>>, vector<8x128xf32>
    tpu.vector_store %arg9[%c0_29, %c0_30], %64 {strides = array<i32>} : memref<8x128xf32, #tpu.memory_space<vmem>>, vector<8x128xf32>,
    return
  }
  func.func @transform_1(%arg0: i32, %arg1: i32, %arg2: memref<16xi32, #tpu.memory_space<smem>>) -> (i32, i32) {
    %c0_i32 = arith.constant 0 : i32
    %c0_i32_0 = arith.constant 0 : i32
    return %arg0, %c0_i32 : i32, i32
  }
  func.func @transform_2(%arg0: i32, %arg1: i32, %arg2: memref<16xi32, #tpu.memory_space<smem>>) -> (i32, i32) {
    %c0_i32 = arith.constant 0 : i32
    %c0_i32_0 = arith.constant 0 : i32
    %c0_i32_1 = arith.constant 0 : i32
    return %c0_i32, %c0_i32_0 : i32, i32
  }
  func.func @transform_3(%arg0: i32, %arg1: i32, %arg2: memref<16xi32, #tpu.memory_space<smem>>) -> (i32, i32) {
    %c1_i32 = arith.constant 1 : i32
    %0 = arith.muli %arg1, %c1_i32 : i32
    %1 = arith.addi %0, %arg0 : i32
    %c0_i32 = arith.constant 0 : i32
    %c0_i32_0 = arith.constant 0 : i32
    return %1, %c0_i32 : i32, i32
  }
  func.func @transform_4(%arg0: i32, %arg1: i32, %arg2: memref<16xi32, #tpu.memory_space<smem>>) -> (i32, i32) {
    %c0_i32 = arith.constant 0 : i32
    %c0_i32_0 = arith.constant 0 : i32
    %c0_i32_1 = arith.constant 0 : i32
    return %c0_i32, %c0_i32_0 : i32, i32
  }
  func.func @transform_5(%arg0: i32, %arg1: i32, %arg2: memref<16xi32, #tpu.memory_space<smem>>) -> (i32, i32) {
    %c0_i32 = arith.constant 0 : i32
    %c0_i32_0 = arith.constant 0 : i32
    %c0_i32_1 = arith.constant 0 : i32
    return %c0_i32, %c0_i32_0 : i32, i32
  }
  func.func @transform_6(%arg0: i32, %arg1: i32, %arg2: memref<16xi32, #tpu.memory_space<smem>>) -> (i32, i32) {
    %c1_i32 = arith.constant 1 : i32
    %0 = arith.muli %arg1, %c1_i32 : i32
    %1 = arith.addi %0, %arg0 : i32
    %c0_i32 = arith.constant 0 : i32
    %c0_i32_0 = arith.constant 0 : i32
    return %1, %c0_i32 : i32, i32
  }
}

</mosaic_0001>

<llo_original>
// kernel: tpu_custom_call.1
$region0: #{tpu_custom_call.1}
  #allocation0 [shape = 'u32[]', space=smem, size = 0x4, offset = 0x4, fixed_abs, tag = 'smem constant byte address 0x4 - core index']
  #allocation1 [shape = 'u32[144,128]{1,0:T(1,128)}', space=vmem, size = 0x12000, scoped, tag = 'internal scratch']
  #allocation2 [shape = 'f32[2,8,128]{2,1,0:T(8,128)}', space=vmem, size = 0x2000, scoped, tag = 'scratch operand']
  #allocation3 [shape = 's32[2]{0}', space=sflag, size = 0x8, scoped, tag = 'scratch operand']
  #allocation4 [shape = 's32[1]{0}', space=sflag, size = 0x4, scoped, tag = 'scoped memory for tpu_custom_call.1']
  #allocation5 [shape = 'u8[512]{0}', space=smem, size = 0x200, scoped, tag = 'prefetched SMEM operand 0']
  #allocation8 [shape = 's32[]', space=sflag, size = 0x4, offset = 0, fixed_abs, tag = 'sflag constant byte address 0x0 - dummy sync flag']
  #allocation9 [shape = 's32[]', space=sflag, size = 0x4, offset = 0, fixed_abs, tag = 'sflag constant byte address 0x0 - dummy sync flag']
  #allocation10 [shape = 'u32[]', space=smem, size = 0x4, offset = 0x44, fixed_abs, tag = 'smem constant byte address 0x44 - assertion arg 0']
  #allocation11 [shape = 'u32[]', space=smem, size = 0x4, offset = 0x48, fixed_abs, tag = 'smem constant byte address 0x48 - assertion arg 1']
  #allocation12 [shape = 's32[]', space=sflag, size = 0x4, offset = 0, fixed_abs, tag = 'sflag constant byte address 0x0 - dummy sync flag']
  #allocation13 [shape = 's32[]', space=sflag, size = 0x4, offset = 0, fixed_abs, tag = 'sflag constant byte address 0x0 - dummy sync flag']
  #allocation14 [shape = 's32[]', space=sflag, size = 0x4, offset = 0, fixed_abs, tag = 'sflag constant byte address 0x0 - dummy sync flag']
  #allocation15 [shape = 's32[]', space=sflag, size = 0x4, offset = 0, fixed_abs, tag = 'sflag constant byte address 0x0 - dummy sync flag']
  #allocation16 [shape = 's32[]', space=sflag, size = 0x4, offset = 0, fixed_abs, tag = 'sflag constant byte address 0x0 - dummy sync flag']
  #allocation17 [shape = 's32[]', space=sflag, size = 0x4, offset = 0, fixed_abs, tag = 'sflag constant byte address 0x0 - dummy sync flag']
  #allocation18 [shape = 's32[]', space=sflag, size = 0x4, offset = 0, fixed_abs, tag = 'sflag constant byte address 0x0 - dummy sync flag']
  #allocation19 [shape = 's32[]', space=sflag, size = 0x4, offset = 0, fixed_abs, tag = 'sflag constant byte address 0x0 - dummy sync flag']
  #allocation20 [shape = 's32[]', space=sflag, size = 0x4, offset = 0, fixed_abs, tag = 'sflag constant byte address 0x0 - dummy sync flag']
  #allocation21 [shape = 's32[]', space=sflag, size = 0x4, offset = 0, fixed_abs, tag = 'sflag constant byte address 0x0 - dummy sync flag']
  #allocation22 [shape = 's32[]', space=sflag, size = 0x4, offset = 0, fixed_abs, tag = 'sflag constant byte address 0x0 - dummy sync flag']
  #allocation23 [shape = 's32[]', space=sflag, size = 0x4, offset = 0, fixed_abs, tag = 'sflag constant byte address 0x0 - dummy sync flag']
  #allocation24 [shape = 's32[]', space=sflag, size = 0x4, offset = 0, fixed_abs, tag = 'sflag constant byte address 0x0 - dummy sync flag']
  #allocation25 [shape = 's32[]', space=sflag, size = 0x4, offset = 0, fixed_abs, tag = 'sflag constant byte address 0x0 - dummy sync flag']
  #allocation26 [shape = 's32[]', space=sflag, size = 0x4, offset = 0, fixed_abs, tag = 'sflag constant byte address 0x0 - dummy sync flag']
  #allocation27 [shape = 's32[]', space=sflag, size = 0x4, offset = 0, fixed_abs, tag = 'sflag constant byte address 0x0 - dummy sync flag']
  #allocation28 [shape = 's32[]', space=sflag, size = 0x4, offset = 0, fixed_abs, tag = 'sflag constant byte address 0x0 - dummy sync flag']
  #allocation29 [shape = 's32[]', space=sflag, size = 0x4, offset = 0, fixed_abs, tag = 'sflag constant byte address 0x0 - dummy sync flag']
  #allocation30 [shape = 's32[]', space=sflag, size = 0x4, offset = 0, fixed_abs, tag = 'sflag constant byte address 0x0 - dummy sync flag']
  #allocation31 [shape = 's32[]', space=sflag, size = 0x4, offset = 0, fixed_abs, tag = 'sflag constant byte address 0x0 - dummy sync flag']
  #allocation32 [shape = 's32[]', space=sflag, size = 0x4, offset = 0, fixed_abs, tag = 'sflag constant byte address 0x0 - dummy sync flag']
  #allocation33 [shape = 's32[]', space=sflag, size = 0x4, offset = 0, fixed_abs, tag = 'sflag constant byte address 0x0 - dummy sync flag']
  #allocation34 [shape = 's32[]', space=sflag, size = 0x4, offset = 0, fixed_abs, tag = 'sflag constant byte address 0x0 - dummy sync flag']
  #allocation35 [shape = 's32[]', space=sflag, size = 0x4, offset = 0, fixed_abs, tag = 'sflag constant byte address 0x0 - dummy sync flag']
  #allocation36 [shape = 's32[]', space=sflag, size = 0x4, offset = 0, fixed_abs, tag = 'sflag constant byte address 0x0 - dummy sync flag']
  #allocation37 [shape = 's32[]', space=sflag, size = 0x4, offset = 0, fixed_abs, tag = 'sflag constant byte address 0x0 - dummy sync flag']
  #allocation38 [shape = 's32[]', space=sflag, size = 0x4, offset = 0, fixed_abs, tag = 'sflag constant byte address 0x0 - dummy sync flag']
  #allocation39 [shape = 's32[]', space=sflag, size = 0x4, offset = 0, fixed_abs, tag = 'sflag constant byte address 0x0 - dummy sync flag']
  #allocation40 [shape = 's32[]', space=sflag, size = 0x4, offset = 0, fixed_abs, tag = 'sflag constant byte address 0x0 - dummy sync flag']
  #allocation41 [shape = 's32[]', space=sflag, size = 0x4, offset = 0, fixed_abs, tag = 'sflag constant byte address 0x0 - dummy sync flag']
  %s0 = inlined_call_operand.vmem [shape: s32[16], index: 0, kind: input, shape index: {}]
  %s1 = inlined_call_operand.hbm [shape: f32[64,128], index: 1, kind: input, shape index: {}]
  %s2 = inlined_call_operand.vmem [shape: f32[8,128], index: 2, kind: input, shape index: {}]
  %s3 = inlined_call_operand.vmem [shape: f32[2,128], index: 3, kind: input, shape index: {}]
  %s4 = inlined_call_operand.vmem [shape: f32[16,1], index: 4, kind: input, shape index: {}]
  %s5 = inlined_call_operand.vmem [shape: f32[1,128], index: 5, kind: input, shape index: {}]
  %s6 = inlined_call_operand.vmem [shape: f32[1,128], index: 6, kind: input, shape index: {}]
  %s7 = inlined_call_operand.hbm [shape: f32[16,128], index: 7, kind: output, shape index: {}]
  %s8 = sld [smem:[#allocation0]]
  $region125: #{tpu_custom_call.1} parent=0
    _
  %s10 = ssub.s32 1, %s8
  %s11 = scalar_select 0, %s10, %s8
  %s12 = sshll.u32 %s0, 4
  %s13 = int_to_ptr.vmem [resolvable:$true] %s12
  %15 = dma.vmem_to_smem %s13, 16, [#allocation5], [#allocation4]
  %16 = dma.done [#allocation4], 16
  %17 = sfence
  $region1: #{tpu_custom_call.1} parent=0
    #allocation6 [shape = 'u8[8192]{0}', space=vmem, size = 0x2000, scoped, tag = 'output window, operand 0']
    #allocation7 [shape = 's32[2]{0}', space=sflag, size = 0x8, scoped, tag = 'scoped memory for tpu_custom_call.1']
    %18 = vsyncpa [#allocation7], 0
    %s19 = scalar_lea.sflag [#allocation7], 1
    %20 = vsyncpa %s19, 0
    loop: start=0, step=1, limit=4
    $region2: #{tpu_custom_call.1} parent=1 // loop_pre_header
      _
    $region3: #{tpu_custom_call.1} parent=1 // loop_header
      %s22 = sphi 0, %s26
      %p23 = scmp.ge.s32.totalorder %s22, 4
      %s29 = sphi 0, %s41
      %s30 = sphi 0, %s37
      %s31 = sphi 0, %s29
      %s32 = sphi 0, %s30
      %s33 = sphi 0, %s31
      %s34 = sphi 0, %s32
      %s44 = sphi 0, %s46
      %s47 = sphi 0, %s44
      %s48 = sphi 0, %s47
      %s64 = sphi 0, %s48
      %s68 = sphi 0, %s68
      %s70 = sphi 0, %s68
      %s71 = sphi 0, %s70
      %s85 = sphi 0, %s71
      %s93 = sphi 0, %s95
      %s96 = sphi 0, %s93
      %s97 = sphi 0, %s96
      %s113 = sphi 0, %s97
      %s117 = sphi 0, %s117
      %s119 = sphi 0, %s117
      %s120 = sphi 0, %s119
      %s134 = sphi 0, %s120
      %s138 = sphi 0, %s138
      %s140 = sphi 0, %s138
      %s141 = sphi 0, %s140
      %s155 = sphi 0, %s141
      %s163 = sphi 0, %s165
      %s166 = sphi 0, %s163
      %s167 = sphi 0, %s166
      %s183 = sphi 0, %s167
    $region4: #{tpu_custom_call.1} parent=1 // loop_header_branch
      %25 = sbr.rel (%p23) target = $region8
    $region5: #{tpu_custom_call.1} parent=1 // loop_body
      %s27 = ssub.s32 %s22, 1
      %s28 = ssub.s32 %s22, 2
      %s35 = sadd.s32 1, %s30
      %p36 = scmp.ge.s32.totalorder %s35, 2
      %s37 = scalar_select %p36, 0, %s35
      %s38 = sadd.s32 1, %s29
      %s39 = scalar_select %p36, %s38, %s29
      %p40 = scmp.ge.s32.totalorder %s39, 1
      %s41 = scalar_select %p40, 0, %s39
      %s42 = ssub.s32 %s29, %s41
      %p43 = scmp.eq.s32.totalorder %s42, 0
      %s45 = sadd.s32 %s44, 1
      %s46 = scalar_select %p43, %s44, %s45
      %p49 = pneg %p43
      %p50 = scmp.eq.s32.totalorder %s22, 1
      %p51 = por %p49, %p50
      %p52 = scmp.ne.s32.totalorder %s44, %s47
      %p53 = scmp.eq.s32.totalorder %s22, 0
      %p54 = por %p52, %p53
      %p55 = scmp.ne.s32.totalorder %s44, %s47
      %p56 = scmp.eq.s32.totalorder %s27, 1
      %p57 = por %p55, %p56
      %p58 = scmp.ne.s32.totalorder %s47, %s48
      %p59 = scmp.eq.s32.totalorder %s27, 0
      %p60 = por %p58, %p59
      %p61 = scmp.ne.s32.totalorder %s47, %s48
      %p62 = scmp.eq.s32.totalorder %s28, 1
      %p63 = por %p61, %p62
      %p65 = scmp.ne.s32.totalorder %s48, %s64
      %p66 = scmp.eq.s32.totalorder %s28, 0
      %p67 = por %p65, %p66
      %s69 = sadd.s32 %s68, 1
      %p72 = scmp.eq.s32.totalorder %s22, 1
      %p73 = scmp.ne.s32.totalorder %s68, %s70
      %p74 = scmp.eq.s32.totalorder %s22, 0
      %p75 = por %p73, %p74
      %p76 = scmp.ne.s32.totalorder %s68, %s70
      %p77 = scmp.eq.s32.totalorder %s27, 1
      %p78 = por %p76, %p77
      %p79 = scmp.ne.s32.totalorder %s70, %s71
      %p80 = scmp.eq.s32.totalorder %s27, 0
      %p81 = por %p79, %p80
      %p82 = scmp.ne.s32.totalorder %s70, %s71
      %p83 = scmp.eq.s32.totalorder %s28, 1
      %p84 = por %p82, %p83
      %p86 = scmp.ne.s32.totalorder %s71, %s85
      %p87 = scmp.eq.s32.totalorder %s28, 0
      %p88 = por %p86, %p87
      %s89 = sadd.s32 %s30, %s29
      %s90 = sadd.s32 %s37, %s41
      %s91 = ssub.s32 %s89, %s90
      %p92 = scmp.eq.s32.totalorder %s91, 0
      %s94 = sadd.s32 %s93, 1
      %s95 = scalar_select %p92, %s93, %s94
      %p98 = pneg %p92
      %p99 = scmp.eq.s32.totalorder %s22, 1
      %p100 = por %p98, %p99
      %p101 = scmp.ne.s32.totalorder %s93, %s96
      %p102 = scmp.eq.s32.totalorder %s22, 0
      %p103 = por %p101, %p102
      %p104 = scmp.ne.s32.totalorder %s93, %s96
      %p105 = scmp.eq.s32.totalorder %s27, 1
      %p106 = por %p104, %p105
      %p107 = scmp.ne.s32.totalorder %s96, %s97
      %p108 = scmp.eq.s32.totalorder %s27, 0
      %p109 = por %p107, %p108
      %p110 = scmp.ne.s32.totalorder %s96, %s97
      %p111 = scmp.eq.s32.totalorder %s28, 1
      %p112 = por %p110, %p111
      %p114 = scmp.ne.s32.totalorder %s97, %s113
      %p115 = scmp.eq.s32.totalorder %s28, 0
      %p116 = por %p114, %p115
      %s118 = sadd.s32 %s117, 1
      %p121 = scmp.eq.s32.totalorder %s22, 1
      %p122 = scmp.ne.s32.totalorder %s117, %s119
      %p123 = scmp.eq.s32.totalorder %s22, 0
      %p124 = por %p122, %p123
      %p125 = scmp.ne.s32.totalorder %s117, %s119
      %p126 = scmp.eq.s32.totalorder %s27, 1
      %p127 = por %p125, %p126
      %p128 = scmp.ne.s32.totalorder %s119, %s120
      %p129 = scmp.eq.s32.totalorder %s27, 0
      %p130 = por %p128, %p129
      %p131 = scmp.ne.s32.totalorder %s119, %s120
      %p132 = scmp.eq.s32.totalorder %s28, 1
      %p133 = por %p131, %p132
      %p135 = scmp.ne.s32.totalorder %s120, %s134
      %p136 = scmp.eq.s32.totalorder %s28, 0
      %p137 = por %p135, %p136
      %s139 = sadd.s32 %s138, 1
      %p142 = scmp.eq.s32.totalorder %s22, 1
      %p143 = scmp.ne.s32.totalorder %s138, %s140
      %p144 = scmp.eq.s32.totalorder %s22, 0
      %p145 = por %p143, %p144
      %p146 = scmp.ne.s32.totalorder %s138, %s140
      %p147 = scmp.eq.s32.totalorder %s27, 1
      %p148 = por %p146, %p147
      %p149 = scmp.ne.s32.totalorder %s140, %s141
      %p150 = scmp.eq.s32.totalorder %s27, 0
      %p151 = por %p149, %p150
      %p152 = scmp.ne.s32.totalorder %s140, %s141
      %p153 = scmp.eq.s32.totalorder %s28, 1
      %p154 = por %p152, %p153
      %p156 = scmp.ne.s32.totalorder %s141, %s155
      %p157 = scmp.eq.s32.totalorder %s28, 0
      %p158 = por %p156, %p157
      %s159 = sadd.s32 %s30, %s29
      %s160 = sadd.s32 %s37, %s41
      %s161 = ssub.s32 %s159, %s160
      %p162 = scmp.eq.s32.totalorder %s161, 0
      %s164 = sadd.s32 %s163, 1
      %s165 = scalar_select %p162, %s163, %s164
      %p168 = pneg %p162
      %p169 = scmp.eq.s32.totalorder %s22, 1
      %p170 = por %p168, %p169
      %p171 = scmp.ne.s32.totalorder %s163, %s166
      %p172 = scmp.eq.s32.totalorder %s22, 0
      %p173 = por %p171, %p172
      %p174 = scmp.ne.s32.totalorder %s163, %s166
      %p175 = scmp.eq.s32.totalorder %s27, 1
      %p176 = por %p174, %p175
      %p177 = scmp.ne.s32.totalorder %s166, %s167
      %p178 = scmp.eq.s32.totalorder %s27, 0
      %p179 = por %p177, %p178
      %p180 = scmp.ne.s32.totalorder %s166, %s167
      %p181 = scmp.eq.s32.totalorder %s28, 1
      %p182 = por %p180, %p181
      %p184 = scmp.ne.s32.totalorder %s167, %s183
      %p185 = scmp.eq.s32.totalorder %s28, 0
      %p186 = por %p184, %p185
      %p187 = scmp.le.s32.totalorder 1, %s22
      %p188 = scmp.lt.s32.totalorder %s22, 3
      %p189 = pnand %p187, %p188
      %p190 = pneg %p189
      // Predicated region
      $region9: #{tpu_custom_call.1} parent=5 // pred_check
        _
      $region10: #{tpu_custom_call.1} parent=5 // pred_check_branch
        %192 = sbr.rel (%p189) target = $region12
      $region11: #{tpu_custom_call.1} parent=5 // pred_region
        %s193 = ssub.s32 %s22, 1
        // Predicated region
        $region13: #{tpu_custom_call.1} parent=11 // pred_check
          %p194 = pneg %p60
        $region14: #{tpu_custom_call.1} parent=11 // pred_check_branch
          %196 = sbr.rel (%p194) target = $region16
        $region15: #{tpu_custom_call.1} parent=11 // pred_region
          %p197 = scmp.lt.s32.totalorder %s31, 0
          %s198 = scalar_select %p197, %s31, 0
          %s199 = smul.addr %s198, 8
          %s200 = scalar_lea.vmem %s2, %s199
        $region16: #{tpu_custom_call.1} parent=11 // pred_fallthru
          _
        // Predicated region
        $region17: #{tpu_custom_call.1} parent=11 // pred_check
          %p201 = pneg %p81
        $region18: #{tpu_custom_call.1} parent=11 // pred_check_branch
          %203 = sbr.rel (%p201) target = $region20
        $region19: #{tpu_custom_call.1} parent=11 // pred_region
          _
        $region20: #{tpu_custom_call.1} parent=11 // pred_fallthru
          _
        // Predicated region
        $region21: #{tpu_custom_call.1} parent=11 // pred_check
          %p204 = pneg %p130
        $region22: #{tpu_custom_call.1} parent=11 // pred_check_branch
          %206 = sbr.rel (%p204) target = $region24
        $region23: #{tpu_custom_call.1} parent=11 // pred_region
          _
        $region24: #{tpu_custom_call.1} parent=11 // pred_fallthru
          _
        // Predicated region
        $region25: #{tpu_custom_call.1} parent=11 // pred_check
          %p207 = pneg %p151
        $region26: #{tpu_custom_call.1} parent=11 // pred_check_branch
          %209 = sbr.rel (%p207) target = $region28
        $region27: #{tpu_custom_call.1} parent=11 // pred_region
          _
        $region28: #{tpu_custom_call.1} parent=11 // pred_fallthru
          _
      $region12: #{tpu_custom_call.1} parent=5 // pred_fallthru
        _
      %p210 = scmp.lt.s32.totalorder %s22, 2
      // Predicated region
      $region29: #{tpu_custom_call.1} parent=5 // pred_check
        %p211 = pneg %p210
      $region30: #{tpu_custom_call.1} parent=5 // pred_check_branch
        %213 = sbr.rel (%p211) target = $region32
      $region31: #{tpu_custom_call.1} parent=5 // pred_region
        // Predicated region
        $region33: #{tpu_custom_call.1} parent=31 // pred_check
          %p214 = pneg %p103
        $region34: #{tpu_custom_call.1} parent=31 // pred_check_branch
          %216 = sbr.rel (%p214) target = $region36
        $region35: #{tpu_custom_call.1} parent=31 // pred_region
          %s217 = sadd.s32 %s30, %s29
          %p218 = scmp.lt.s32.totalorder %s217, 1
          %s219 = scalar_select %p218, %s217, 1
          %s220 = smul.addr %s219, 8
          %s221 = scalar_lea.vmem %s4, %s220
          %s222 = sadd.s32 %s30, %s29
        $region36: #{tpu_custom_call.1} parent=31 // pred_fallthru
          _
      $region32: #{tpu_custom_call.1} parent=5 // pred_fallthru
        _
      %p223 = scmp.le.s32.totalorder 1, %s22
      %p224 = scmp.lt.s32.totalorder %s22, 3
      %p225 = pnand %p223, %p224
      %p226 = pneg %p225
      // Predicated region
      $region37: #{tpu_custom_call.1} parent=5 // pred_check
        _
      $region38: #{tpu_custom_call.1} parent=5 // pred_check_branch
        %228 = sbr.rel (%p225) target = $region40
      $region39: #{tpu_custom_call.1} parent=5 // pred_region
        %s229 = ssub.s32 %s22, 1
        %p230 = scmp.lt.s32.totalorder %s31, 0
        %s231 = scalar_select %p230, %s31, 0
        %s232 = smul.addr %s231, 8
        %s233 = scalar_lea.vmem %s2, %s232
        %p234 = pneg %p60
        %p235 = pneg %p57
        %p236 = pneg %p81
        %p237 = pneg %p78
        %s238 = sadd.s32 %s32, %s31
        %p239 = scmp.lt.s32.totalorder %s238, 1
        %s240 = scalar_select %p239, %s238, 1
        %s241 = smul.addr %s240, 8
        %s242 = scalar_lea.vmem %s4, %s241
        %p243 = pneg %p109
        %p244 = pneg %p106
        %p245 = pneg %p130
        %p246 = pneg %p127
        %p247 = pneg %p151
        %p248 = pneg %p148
        %p249 = pneg %p179
        %p250 = pneg %p176
        %s251 = sand.u32 %s166, 1
        %s252 = scalar_lea.sflag [#allocation7], %s251
        %s253 = sand.u32 %s166, 1
        %s254 = smul.addr %s253, 8
        %s255 = scalar_lea.vmem [#allocation6], %s254
        %p256 = scmp.lt.s32.totalorder %s31, 0
        %s257 = scalar_select %p256, %s31, 0
        %s258 = smul.addr %s257, 8
        %s259 = scalar_lea.vmem %s2, %s258
        %s260 = sadd.s32 %s32, %s31
        %p261 = scmp.lt.s32.totalorder %s260, 1
        %s262 = scalar_select %p261, %s260, 1
        %s263 = smul.addr %s262, 8
        %s264 = scalar_lea.vmem %s4, %s263
        %s265 = sadd.s32 %s32, %s31
        %s266 = sadd.s32 %s32, %s31
        %p267 = scmp.lt.s32.totalorder %s32, 0
        %s268 = ssub.s32 0, %s32
        %s269 = scalar_select %p267, %s268, %s32
        %s270 = sand.u32 %s269, 1
        %s271 = ssub.s32 0, %s270
        %s272 = scalar_select %p267, %s271, %s270
        %p273 = scmp.ne.s32.totalorder %s272, 0
        %p274 = scmp.lt.s32.totalorder %s272, 0
        %p275 = pnand %p274, %p273
        %p276 = pneg %p275
        %s277 = sadd.s32 %s272, 2
        %s278 = scalar_select %p276, %s277, %s272
        %s279 = smul.u32 %s31, 8
        %p280 = scmp.eq.s32.totalorder %s32, 0
        // Predicated region
        $region41: #{tpu_custom_call.1} parent=39 // pred_check
          %p281 = pneg %p280
        $region42: #{tpu_custom_call.1} parent=39 // pred_check_branch
          %283 = sbr.rel (%p281) target = $region44
        $region43: #{tpu_custom_call.1} parent=39 // pred_region
          %s284 = sld [smem:[#allocation5 + %s279]]
          %s285 = smul.addr %s284, 16
          %s286 = scalar_lea.hbm %s1, %s285
          // Predicated region
          $region45: #{tpu_custom_call.1} parent=43 // pred_check
            _
          $region46: #{tpu_custom_call.1} parent=43 // pred_check_branch
            %288 = sbr.rel target = $region48
          $region47: #{tpu_custom_call.1} parent=43 // pred_region
            %289 = sst [smem:[#allocation10]] [#allocation9]
            %290 = sst [smem:[#allocation11]] [#allocation8]
          $region48: #{tpu_custom_call.1} parent=43 // pred_fallthru
            _
          %292 = shalt.err (0)
          %s294 = sshll.u32 [#allocation2], 4
          %s295 = int_to_ptr.vmem [resolvable:$true] %s294
          %297 = dma.hbm_to_vmem [thread:$0]  %s286, 16, %s295, [#allocation3]
          %s298 = sadd.s32 %s279, 1
          %s299 = sld [smem:[#allocation5 + %s298]]
          %s300 = smul.addr %s299, 16
          %s301 = scalar_lea.hbm %s1, %s300
          %s302 = scalar_lea.vmem [#allocation2], 1
          // Predicated region
          $region49: #{tpu_custom_call.1} parent=43 // pred_check
            _
          $region50: #{tpu_custom_call.1} parent=43 // pred_check_branch
            %304 = sbr.rel target = $region52
          $region51: #{tpu_custom_call.1} parent=43 // pred_region
            %305 = sst [smem:[#allocation10]] [#allocation13]
            %306 = sst [smem:[#allocation11]] [#allocation12]
          $region52: #{tpu_custom_call.1} parent=43 // pred_fallthru
            _
          %308 = shalt.err (0)
          %s310 = sshll.u32 %s302, 4
          %s311 = int_to_ptr.vmem [resolvable:$true] %s310
          %313 = dma.hbm_to_vmem [thread:$0]  %s301, 16, %s311, [#allocation3]
          %s314 = sadd.s32 %s279, 2
          %s315 = sld [smem:[#allocation5 + %s314]]
          %s316 = smul.addr %s315, 16
          %s317 = scalar_lea.hbm %s1, %s316
          %s318 = scalar_lea.vmem [#allocation2], 2
          // Predicated region
          $region53: #{tpu_custom_call.1} parent=43 // pred_check
            _
          $region54: #{tpu_custom_call.1} parent=43 // pred_check_branch
            %320 = sbr.rel target = $region56
          $region55: #{tpu_custom_call.1} parent=43 // pred_region
            %321 = sst [smem:[#allocation10]] [#allocation15]
            %322 = sst [smem:[#allocation11]] [#allocation14]
          $region56: #{tpu_custom_call.1} parent=43 // pred_fallthru
            _
          %324 = shalt.err (0)
          %s326 = sshll.u32 %s318, 4
          %s327 = int_to_ptr.vmem [resolvable:$true] %s326
          %329 = dma.hbm_to_vmem [thread:$0]  %s317, 16, %s327, [#allocation3]
          %s330 = sadd.s32 %s279, 3
          %s331 = sld [smem:[#allocation5 + %s330]]
          %s332 = smul.addr %s331, 16
          %s333 = scalar_lea.hbm %s1, %s332
          %s334 = scalar_lea.vmem [#allocation2], 3
          // Predicated region
          $region57: #{tpu_custom_call.1} parent=43 // pred_check
            _
          $region58: #{tpu_custom_call.1} parent=43 // pred_check_branch
            %336 = sbr.rel target = $region60
          $region59: #{tpu_custom_call.1} parent=43 // pred_region
            %337 = sst [smem:[#allocation10]] [#allocation17]
            %338 = sst [smem:[#allocation11]] [#allocation16]
          $region60: #{tpu_custom_call.1} parent=43 // pred_fallthru
            _
          %340 = shalt.err (0)
          %s342 = sshll.u32 %s334, 4
          %s343 = int_to_ptr.vmem [resolvable:$true] %s342
          %345 = dma.hbm_to_vmem [thread:$0]  %s333, 16, %s343, [#allocation3]
          %s346 = sadd.s32 %s279, 4
          %s347 = sld [smem:[#allocation5 + %s346]]
          %s348 = smul.addr %s347, 16
          %s349 = scalar_lea.hbm %s1, %s348
          %s350 = scalar_lea.vmem [#allocation2], 4
          // Predicated region
          $region61: #{tpu_custom_call.1} parent=43 // pred_check
            _
          $region62: #{tpu_custom_call.1} parent=43 // pred_check_branch
            %352 = sbr.rel target = $region64
          $region63: #{tpu_custom_call.1} parent=43 // pred_region
            %353 = sst [smem:[#allocation10]] [#allocation19]
            %354 = sst [smem:[#allocation11]] [#allocation18]
          $region64: #{tpu_custom_call.1} parent=43 // pred_fallthru
            _
          %356 = shalt.err (0)
          %s358 = sshll.u32 %s350, 4
          %s359 = int_to_ptr.vmem [resolvable:$true] %s358
          %361 = dma.hbm_to_vmem [thread:$0]  %s349, 16, %s359, [#allocation3]
          %s362 = sadd.s32 %s279, 5
          %s363 = sld [smem:[#allocation5 + %s362]]
          %s364 = smul.addr %s363, 16
          %s365 = scalar_lea.hbm %s1, %s364
          %s366 = scalar_lea.vmem [#allocation2], 5
          // Predicated region
          $region65: #{tpu_custom_call.1} parent=43 // pred_check
            _
          $region66: #{tpu_custom_call.1} parent=43 // pred_check_branch
            %368 = sbr.rel target = $region68
          $region67: #{tpu_custom_call.1} parent=43 // pred_region
            %369 = sst [smem:[#allocation10]] [#allocation21]
            %370 = sst [smem:[#allocation11]] [#allocation20]
          $region68: #{tpu_custom_call.1} parent=43 // pred_fallthru
            _
          %372 = shalt.err (0)
          %s374 = sshll.u32 %s366, 4
          %s375 = int_to_ptr.vmem [resolvable:$true] %s374
          %377 = dma.hbm_to_vmem [thread:$0]  %s365, 16, %s375, [#allocation3]
          %s378 = sadd.s32 %s279, 6
          %s379 = sld [smem:[#allocation5 + %s378]]
          %s380 = smul.addr %s379, 16
          %s381 = scalar_lea.hbm %s1, %s380
          %s382 = scalar_lea.vmem [#allocation2], 6
          // Predicated region
          $region69: #{tpu_custom_call.1} parent=43 // pred_check
            _
          $region70: #{tpu_custom_call.1} parent=43 // pred_check_branch
            %384 = sbr.rel target = $region72
          $region71: #{tpu_custom_call.1} parent=43 // pred_region
            %385 = sst [smem:[#allocation10]] [#allocation23]
            %386 = sst [smem:[#allocation11]] [#allocation22]
          $region72: #{tpu_custom_call.1} parent=43 // pred_fallthru
            _
          %388 = shalt.err (0)
          %s390 = sshll.u32 %s382, 4
          %s391 = int_to_ptr.vmem [resolvable:$true] %s390
          %393 = dma.hbm_to_vmem [thread:$0]  %s381, 16, %s391, [#allocation3]
          %s394 = sadd.s32 %s279, 7
          %s395 = sld [smem:[#allocation5 + %s394]]
          %s396 = smul.addr %s395, 16
          %s397 = scalar_lea.hbm %s1, %s396
          %s398 = scalar_lea.vmem [#allocation2], 7
          // Predicated region
          $region73: #{tpu_custom_call.1} parent=43 // pred_check
            _
          $region74: #{tpu_custom_call.1} parent=43 // pred_check_branch
            %400 = sbr.rel target = $region76
          $region75: #{tpu_custom_call.1} parent=43 // pred_region
            %401 = sst [smem:[#allocation10]] [#allocation25]
            %402 = sst [smem:[#allocation11]] [#allocation24]
          $region76: #{tpu_custom_call.1} parent=43 // pred_fallthru
            _
          %404 = shalt.err (0)
          %s406 = sshll.u32 %s398, 4
          %s407 = int_to_ptr.vmem [resolvable:$true] %s406
          %409 = dma.hbm_to_vmem [thread:$0]  %s397, 16, %s407, [#allocation3]
        $region44: #{tpu_custom_call.1} parent=39 // pred_fallthru
          _
        %s410 = sadd.s32 %s32, 1
        %p411 = scmp.lt.s32.totalorder %s410, 2
        // Predicated region
        $region77: #{tpu_custom_call.1} parent=39 // pred_check
          %p412 = pneg %p411
        $region78: #{tpu_custom_call.1} parent=39 // pred_check_branch
          %414 = sbr.rel (%p412) target = $region80
        $region79: #{tpu_custom_call.1} parent=39 // pred_region
          %s415 = ssub.s32 1, %s278
          %s416 = smul.u32 %s410, 8
          %s417 = sadd.s32 %s416, %s279
          %s418 = sld [smem:[#allocation5 + %s417]]
          %s419 = smul.addr %s418, 16
          %s420 = scalar_lea.hbm %s1, %s419
          %s421 = smul.u32 %s415, 8
          %s422 = scalar_lea.vmem [#allocation2], %s421
          %s423 = scalar_lea.sflag [#allocation3], %s415
          // Predicated region
          $region81: #{tpu_custom_call.1} parent=79 // pred_check
            _
          $region82: #{tpu_custom_call.1} parent=79 // pred_check_branch
            %425 = sbr.rel target = $region84
          $region83: #{tpu_custom_call.1} parent=79 // pred_region
            %426 = sst [smem:[#allocation10]] [#allocation27]
            %427 = sst [smem:[#allocation11]] [#allocation26]
          $region84: #{tpu_custom_call.1} parent=79 // pred_fallthru
            _
          %429 = shalt.err (0)
          %s431 = sshll.u32 %s422, 4
          %s432 = int_to_ptr.vmem [resolvable:$true] %s431
          %434 = dma.hbm_to_vmem [thread:$0]  %s420, 16, %s432, %s423
          %s435 = sadd.s32 %s417, 1
          %s436 = sld [smem:[#allocation5 + %s435]]
          %s437 = smul.addr %s436, 16
          %s438 = scalar_lea.hbm %s1, %s437
          %s439 = sadd.s32 1, %s421
          %s440 = scalar_lea.vmem [#allocation2], %s439
          // Predicated region
          $region85: #{tpu_custom_call.1} parent=79 // pred_check
            _
          $region86: #{tpu_custom_call.1} parent=79 // pred_check_branch
            %442 = sbr.rel target = $region88
          $region87: #{tpu_custom_call.1} parent=79 // pred_region
            %443 = sst [smem:[#allocation10]] [#allocation29]
            %444 = sst [smem:[#allocation11]] [#allocation28]
          $region88: #{tpu_custom_call.1} parent=79 // pred_fallthru
            _
          %446 = shalt.err (0)
          %s448 = sshll.u32 %s440, 4
          %s449 = int_to_ptr.vmem [resolvable:$true] %s448
          %451 = dma.hbm_to_vmem [thread:$0]  %s438, 16, %s449, %s423
          %s452 = sadd.s32 %s417, 2
          %s453 = sld [smem:[#allocation5 + %s452]]
          %s454 = smul.addr %s453, 16
          %s455 = scalar_lea.hbm %s1, %s454
          %s456 = sadd.s32 2, %s421
          %s457 = scalar_lea.vmem [#allocation2], %s456
          // Predicated region
          $region89: #{tpu_custom_call.1} parent=79 // pred_check
            _
          $region90: #{tpu_custom_call.1} parent=79 // pred_check_branch
            %459 = sbr.rel target = $region92
          $region91: #{tpu_custom_call.1} parent=79 // pred_region
            %460 = sst [smem:[#allocation10]] [#allocation31]
            %461 = sst [smem:[#allocation11]] [#allocation30]
          $region92: #{tpu_custom_call.1} parent=79 // pred_fallthru
            _
          %463 = shalt.err (0)
          %s465 = sshll.u32 %s457, 4
          %s466 = int_to_ptr.vmem [resolvable:$true] %s465
          %468 = dma.hbm_to_vmem [thread:$0]  %s455, 16, %s466, %s423
          %s469 = sadd.s32 %s417, 3
          %s470 = sld [smem:[#allocation5 + %s469]]
          %s471 = smul.addr %s470, 16
          %s472 = scalar_lea.hbm %s1, %s471
          %s473 = sadd.s32 3, %s421
          %s474 = scalar_lea.vmem [#allocation2], %s473
          // Predicated region
          $region93: #{tpu_custom_call.1} parent=79 // pred_check
            _
          $region94: #{tpu_custom_call.1} parent=79 // pred_check_branch
            %476 = sbr.rel target = $region96
          $region95: #{tpu_custom_call.1} parent=79 // pred_region
            %477 = sst [smem:[#allocation10]] [#allocation33]
            %478 = sst [smem:[#allocation11]] [#allocation32]
          $region96: #{tpu_custom_call.1} parent=79 // pred_fallthru
            _
          %480 = shalt.err (0)
          %s482 = sshll.u32 %s474, 4
          %s483 = int_to_ptr.vmem [resolvable:$true] %s482
          %485 = dma.hbm_to_vmem [thread:$0]  %s472, 16, %s483, %s423
          %s486 = sadd.s32 %s417, 4
          %s487 = sld [smem:[#allocation5 + %s486]]
          %s488 = smul.addr %s487, 16
          %s489 = scalar_lea.hbm %s1, %s488
          %s490 = sadd.s32 4, %s421
          %s491 = scalar_lea.vmem [#allocation2], %s490
          // Predicated region
          $region97: #{tpu_custom_call.1} parent=79 // pred_check
            _
          $region98: #{tpu_custom_call.1} parent=79 // pred_check_branch
            %493 = sbr.rel target = $region100
          $region99: #{tpu_custom_call.1} parent=79 // pred_region
            %494 = sst [smem:[#allocation10]] [#allocation35]
            %495 = sst [smem:[#allocation11]] [#allocation34]
          $region100: #{tpu_custom_call.1} parent=79 // pred_fallthru
            _
          %497 = shalt.err (0)
          %s499 = sshll.u32 %s491, 4
          %s500 = int_to_ptr.vmem [resolvable:$true] %s499
          %502 = dma.hbm_to_vmem [thread:$0]  %s489, 16, %s500, %s423
          %s503 = sadd.s32 %s417, 5
          %s504 = sld [smem:[#allocation5 + %s503]]
          %s505 = smul.addr %s504, 16
          %s506 = scalar_lea.hbm %s1, %s505
          %s507 = sadd.s32 5, %s421
          %s508 = scalar_lea.vmem [#allocation2], %s507
          // Predicated region
          $region101: #{tpu_custom_call.1} parent=79 // pred_check
            _
          $region102: #{tpu_custom_call.1} parent=79 // pred_check_branch
            %510 = sbr.rel target = $region104
          $region103: #{tpu_custom_call.1} parent=79 // pred_region
            %511 = sst [smem:[#allocation10]] [#allocation37]
            %512 = sst [smem:[#allocation11]] [#allocation36]
          $region104: #{tpu_custom_call.1} parent=79 // pred_fallthru
            _
          %514 = shalt.err (0)
          %s516 = sshll.u32 %s508, 4
          %s517 = int_to_ptr.vmem [resolvable:$true] %s516
          %519 = dma.hbm_to_vmem [thread:$0]  %s506, 16, %s517, %s423
          %s520 = sadd.s32 %s417, 6
          %s521 = sld [smem:[#allocation5 + %s520]]
          %s522 = smul.addr %s521, 16
          %s523 = scalar_lea.hbm %s1, %s522
          %s524 = sadd.s32 6, %s421
          %s525 = scalar_lea.vmem [#allocation2], %s524
          // Predicated region
          $region105: #{tpu_custom_call.1} parent=79 // pred_check
            _
          $region106: #{tpu_custom_call.1} parent=79 // pred_check_branch
            %527 = sbr.rel target = $region108
          $region107: #{tpu_custom_call.1} parent=79 // pred_region
            %528 = sst [smem:[#allocation10]] [#allocation39]
            %529 = sst [smem:[#allocation11]] [#allocation38]
          $region108: #{tpu_custom_call.1} parent=79 // pred_fallthru
            _
          %531 = shalt.err (0)
          %s533 = sshll.u32 %s525, 4
          %s534 = int_to_ptr.vmem [resolvable:$true] %s533
          %536 = dma.hbm_to_vmem [thread:$0]  %s523, 16, %s534, %s423
          %s537 = sadd.s32 %s417, 7
          %s538 = sld [smem:[#allocation5 + %s537]]
          %s539 = smul.addr %s538, 16
          %s540 = scalar_lea.hbm %s1, %s539
          %s541 = sadd.s32 7, %s421
          %s542 = scalar_lea.vmem [#allocation2], %s541
          // Predicated region
          $region109: #{tpu_custom_call.1} parent=79 // pred_check
            _
          $region110: #{tpu_custom_call.1} parent=79 // pred_check_branch
            %544 = sbr.rel target = $region112
          $region111: #{tpu_custom_call.1} parent=79 // pred_region
            %545 = sst [smem:[#allocation10]] [#allocation41]
            %546 = sst [smem:[#allocation11]] [#allocation40]
          $region112: #{tpu_custom_call.1} parent=79 // pred_fallthru
            _
          %548 = shalt.err (0)
          %s550 = sshll.u32 %s542, 4
          %s551 = int_to_ptr.vmem [resolvable:$true] %s550
          %553 = dma.hbm_to_vmem [thread:$0]  %s540, 16, %s551, %s423
        $region80: #{tpu_custom_call.1} parent=39 // pred_fallthru
          _
        %v554 = vld [vmem:[%s264] sm:$0xff]
        %v555 = vld [vmem:[%s3] sm:$0x1]
        %v556 = vld [vmem:[%s3 + $0x1] sm:$0x1]
        %v557 = vld [vmem:[%s259] sm:$0xff]
        %v558 = vlaneseq
        %v559 = vshrl.u32 %v558, 7
        %v560 = vsub.s32 0, %v559
        %v561 = vrot.slane %v555, %v560
        %v562 = vadd.f32 %v557, %v561
        %v563 = vsub.f32 %v556, %v555
        %565 = vset.pattern.permute.xlu0 0
        %566 = vperm.xlu0 %565, %v554
        %v567 = vpop.permute.xlu0 %566
        %v569 = vlaneseq
        %v570 = vshrl.u32 %v569, 7
        %v571 = vsub.s32 0, %v570
        %v572 = vrot.slane %v563, %v571
        %v573 = vmul.f32 %v567, %v572
        %v574 = vadd.f32 %v562, %v573
        %s575 = smul.u32 %s278, 8
        %s576 = scalar_lea.vmem [#allocation2], %s575
        %s577 = scalar_lea.sflag [#allocation3], %s278
        %s578 = smul.u32 8, 1
        %s579 = sshll.u32 %s578, 4
        %580 = dma.done %s577, %s579
        %v581 = vld [vmem:[%s576] sm:$0xff]
        %v582 = vadd.f32 %v581, %v574
        %583 = vadd.xlane.f32.xlu0 %v582
        %v584 = vpop.xlane.xlu0 %583
        %v585 = vmul.f32 %v584, 0.0078125
        %v586 = vmul.f32 %v582, %v582
        %587 = vadd.xlane.f32.xlu0 %v586
        %v588 = vpop.xlane.xlu0 %587
        %v589 = vmul.f32 %v588, 0.0078125
        %v590 = vmul.f32 %v585, %v585
        %v591 = vsub.f32 %v589, %v590
        %v592 = vmax.f32 %v591, 0.0
        %v593 = vadd.f32 %v592, 1e-05
        %v594 = vrsqrt.pop %v593
        %v595 = vsub.f32 %v582, %v585
        %v596 = vmul.f32 %v595, %v594
        %v597 = vld [vmem:[%s5] sm:$0x1]
        %v599 = vlaneseq
        %v600 = vshrl.u32 %v599, 7
        %v601 = vsub.s32 0, %v600
        %v602 = vrot.slane %v597, %v601
        %v604 = vmul.f32 %v596, %v602
        %v605 = vld [vmem:[%s6] sm:$0x1]
        %v607 = vlaneseq
        %v608 = vshrl.u32 %v607, 7
        %v609 = vsub.s32 0, %v608
        %v610 = vrot.slane %v605, %v609
        %v612 = vadd.f32 %v604, %v610
        %613 = vst [vmem:[%s255] sm:$0xff] %v612
        %s614 = sand.u32 %s166, 1
        %s615 = scalar_lea.sflag [#allocation7], %s614
        %s616 = sand.u32 %s166, 1
        %s617 = smul.addr %s616, 8
        %s618 = scalar_lea.vmem [#allocation6], %s617
        // Predicated region
        $region113: #{tpu_custom_call.1} parent=39 // pred_check
          %p619 = pneg %p176
        $region114: #{tpu_custom_call.1} parent=39 // pred_check_branch
          %621 = sbr.rel (%p619) target = $region116
        $region115: #{tpu_custom_call.1} parent=39 // pred_region
          %s622 = sadd.s32 %s32, %s31
          %s624 = ssub.s32 128, 128
          %625 = vsyncadd %s615, %s624
          %s626 = smul.addr %s622, 128
          %s627 = scalar_lea.hbm %s7, %s626
          %s629 = sshll.u32 %s618, 4
          %s630 = int_to_ptr.vmem [resolvable:$true] %s629
          %632 = dma.vmem_to_hbm [thread:$0]  %s630, 128, %s627, %s615
        $region116: #{tpu_custom_call.1} parent=39 // pred_fallthru
          _
      $region40: #{tpu_custom_call.1} parent=5 // pred_fallthru
        _
      %p633 = scmp.le.s32.totalorder 2, %s22
      // Predicated region
      $region117: #{tpu_custom_call.1} parent=5 // pred_check
        %p634 = pneg %p633
      $region118: #{tpu_custom_call.1} parent=5 // pred_check_branch
        %636 = sbr.rel (%p634) target = $region120
      $region119: #{tpu_custom_call.1} parent=5 // pred_region
        %s637 = ssub.s32 %s22, 2
        // Predicated region
        $region121: #{tpu_custom_call.1} parent=119 // pred_check
          %p638 = pneg %p182
        $region122: #{tpu_custom_call.1} parent=119 // pred_check_branch
          %640 = sbr.rel (%p638) target = $region124
        $region123: #{tpu_custom_call.1} parent=119 // pred_region
          %s641 = sand.u32 %s167, 1
          %s642 = scalar_lea.sflag [#allocation7], %s641
          %s643 = sand.u32 %s167, 1
          %s644 = smul.addr %s643, 8
          %s645 = scalar_lea.vmem [#allocation6], %s644
          %646 = dma.done %s642, 128
        $region124: #{tpu_custom_call.1} parent=119 // pred_fallthru
          _
      $region120: #{tpu_custom_call.1} parent=5 // pred_fallthru
        _
    $region6: #{tpu_custom_call.1} parent=1 // loop_footer
      %s26 = sadd.s32 1, %s22
    $region7: #{tpu_custom_call.1} parent=1 // loop_footer_branch
      %21 = sbr.rel target = $region3
    $region8: #{tpu_custom_call.1} parent=1 // loop_exit
      _
    %647 = vsyncpa [#allocation7], 1
    %s648 = scalar_lea.sflag [#allocation7], 1
    %649 = vsyncpa %s648, 1
  %650 = vsyncmov [#allocation3]
  %s651 = vpop.sfrf %650
  %p652 = scmp.eq.s32.totalorder %s651, 0
  %p653 = pneg %p652
  %655 = shalt.err (%p653)
  %s656 = scalar_lea.sflag [#allocation3], 1
  %657 = vsyncmov %s656
  %s658 = vpop.sfrf %657
  %p659 = scmp.eq.s32.totalorder %s658, 0
  %p660 = pneg %p659
  %662 = shalt.err (%p660)

</llo_original>
